<compile_context>
chip_gen: v7x
topology: tpu7x:2x2x1
jax: 0.10.0
libtpu: 0.0.40
codegen_flags: <defaults>
</compile_context>

<pallas_src>
import math
import jax
import jax.numpy as jnp
from jax.experimental import pallas as pl
from jax.experimental.pallas import tpu as pltpu


def _round_up(x, m):
    return (x + m - 1) // m * m


def _make_kernel(C, L, TL, dilation, out_dtype, compute_dtype):
    inv_sqrt2 = 1.0 / math.sqrt(2.0)
    TW = TL + 2 * dilation

    def kernel(xw_ref, cond_ref, d_ref, wdil_ref, wcond_ref, b1_ref,
               wout_ref, b2_ref, res_ref, skip_ref):
        t = pl.program_id(1)

        x_w = xw_ref[0, 0]                                   # (C, TW) compute dtype
        d = d_ref[0]                                         # (C, 1)  f32

        # y = x + d, with the dilated conv's zero padding re-applied at the true
        # sequence edges (padding columns must be 0, not 0 + d).
        pos = jax.lax.broadcasted_iota(jnp.int32, (1, TW), 1) + t * TL
        valid = (pos >= dilation) & (pos < dilation + L)
        y = jnp.where(valid, x_w.astype(jnp.float32) + d, 0.0)
        y_c = y.astype(compute_dtype)                        # (C, TW)

        # Dilated conv (3 taps) + conditioner projection: accumulating MXU matmuls.
        acc = jnp.dot(wdil_ref[0], y_c[:, 0:TL],
                      preferred_element_type=jnp.float32)
        acc = acc + jnp.dot(wdil_ref[1], y_c[:, dilation:dilation + TL],
                            preferred_element_type=jnp.float32)
        acc = acc + jnp.dot(wdil_ref[2], y_c[:, 2 * dilation:2 * dilation + TL],
                            preferred_element_type=jnp.float32)
        acc = acc + jnp.dot(wcond_ref[...], cond_ref[0].astype(compute_dtype),
                            preferred_element_type=jnp.float32)
        acc = acc + b1_ref[...]                              # (2C, TL) f32

        # Gated activation in f32 (EUP/VPU).
        z = jax.nn.sigmoid(acc[:C]) * jnp.tanh(acc[C:])      # (C, TL)

        # Output projection (k=1 conv == channel matmul).
        out = jnp.dot(wout_ref[...], z.astype(compute_dtype),
                      preferred_element_type=jnp.float32) + b2_ref[...]   # (2C, TL)

        # Residual add from the window's center columns (== this tile's x).
        x_c = x_w[:, dilation:dilation + TL].astype(jnp.float32)
        res_ref[0] = ((x_c + out[:C]) * inv_sqrt2).astype(out_dtype)
        skip_ref[0] = out[C:].astype(out_dtype)

    return kernel


def residual_block_pallas(x, diffusion_step, conditioner, params, dilation,
                          *, compute_dtype=jnp.bfloat16, time_tile=2048):
    """x: (B, C, L), diffusion_step: (B, 512), conditioner: (B, M, L)  [PyTorch NCL]."""
    B, C, L = x.shape
    M = conditioner.shape[1]
    dtype = x.dtype

    # ---- wrapper-side prep (XLA) ----
    # Hoisted diffusion projection: (B,512)@(512,C) GEMM; shaped for NCL broadcast.
    d = (diffusion_step @ params["diff_w"].T + params["diff_b"]).astype(jnp.float32)
    d = d[:, :, None]                                                 # (B, C, 1)

    # Time (lane) tiling: TL must be a multiple of 128 when there is more than one tile.
    if L <= time_tile:
        nt, TL = 1, L
        # v7x megacore: with B == 1 keep the grid splittable across the 2 TensorCores.
        if B == 1 and L > 1024:
            TL = _round_up(pl.cdiv(L, 2), 128)
            nt = pl.cdiv(L, TL)
    else:
        base = max(128, _round_up(time_tile, 128))
        nt = pl.cdiv(L, base)
        TL = _round_up(pl.cdiv(L, nt), 128)
        nt = pl.cdiv(L, TL)
    L_pad = nt * TL
    TW = TL + 2 * dilation

    # Overlapping halo windows of the edge-padded x (no 3x tap duplication in HBM).
    x_pad = jnp.pad(x, ((0, 0), (0, 0), (dilation, dilation + L_pad - L)))
    x_win = jnp.stack([x_pad[:, :, t * TL: t * TL + TW] for t in range(nt)],
                      axis=1).astype(compute_dtype)                   # (B, nt, C, TW)

    cond_p = conditioner
    if L_pad != L:
        cond_p = jnp.pad(cond_p, ((0, 0), (0, 0), (0, L_pad - L)))    # (B, M, L_pad)

    # Weights / biases in channels-first (output-major) layouts.
    w_dil = jnp.transpose(params["dil_w"], (2, 0, 1)).astype(compute_dtype)   # (3, 2C, C)
    w_cond = params["cond_w"][:, :, 0].astype(compute_dtype)                  # (2C, M)
    b1 = (params["dil_b"] + params["cond_b"])[:, None].astype(jnp.float32)    # (2C, 1)
    w_out = params["out_w"][:, :, 0].astype(compute_dtype)                    # (2C, C)
    b2 = params["out_b"][:, None].astype(jnp.float32)                         # (2C, 1)

    # Per-generation VMEM budget: 2x input tiles + 2x output tiles + weights + margin,
    # capped at 75% of physical VMEM (~48 MiB on v7x, ~96 MiB on v5e/v6e).
    cb = jnp.dtype(compute_dtype).itemsize
    ob = jnp.dtype(dtype).itemsize
    in_tile = C * TW * cb + M * TL * jnp.dtype(cond_p.dtype).itemsize + C * 4
    out_tile = 2 * C * TL * ob
    w_bytes = (3 * 2 * C * C + 2 * C * M + 2 * C * C) * cb + 2 * (2 * C) * 4
    budget = 2 * in_tile + 2 * out_tile + w_bytes + (8 << 20)
    try:
        cap = int(pltpu.get_tpu_info().vmem_capacity_bytes)
    except Exception:
        cap = 64 << 20
    vmem_limit = int(min(max(budget, 32 << 20), cap * 3 // 4))

    kernel = _make_kernel(C, L, TL, dilation, dtype, compute_dtype)

    def _invoke(single_buffered_weights):
        def const_spec(shape):
            idx = lambda b, t, _n=len(shape): (0,) * _n
            if single_buffered_weights:
                # Constant index map -> no need to double-buffer resident weights.
                return pl.BlockSpec(shape, idx, pipeline_mode=pl.Buffered(1))
            return pl.BlockSpec(shape, idx)

        in_specs = [
            pl.BlockSpec((1, 1, C, TW), lambda b, t: (b, t, 0, 0)),   # x halo windows
            pl.BlockSpec((1, M, TL), lambda b, t: (b, 0, t)),         # conditioner (NCL)
            pl.BlockSpec((1, C, 1), lambda b, t: (b, 0, 0)),          # diffusion proj d
            const_spec((3, 2 * C, C)),                                # dilated conv taps
            const_spec((2 * C, M)),                                   # conditioner proj
            const_spec((2 * C, 1)),                                   # fused bias 1
            const_spec((2 * C, C)),                                   # output proj
            const_spec((2 * C, 1)),                                   # bias 2
        ]
        out_specs = (pl.BlockSpec((1, C, TL), lambda b, t: (b, 0, t)),   # residual
                     pl.BlockSpec((1, C, TL), lambda b, t: (b, 0, t)))   # skip

        return pl.pallas_call(
            kernel,
            out_shape=(jax.ShapeDtypeStruct((B, C, L_pad), dtype),
                       jax.ShapeDtypeStruct((B, C, L_pad), dtype)),
            grid_spec=pltpu.PrefetchScalarGridSpec(
                num_scalar_prefetch=0,
                grid=(B, nt),
                in_specs=in_specs,
                out_specs=out_specs),
            compiler_params=pltpu.CompilerParams(
                dimension_semantics=("parallel", "parallel"),
                vmem_limit_bytes=vmem_limit),
        )(x_win, cond_p, d, w_dil, w_cond, b1, w_out, b2)

    try:
        residual, skip = jax.block_until_ready(_invoke(True))
    except Exception:
        # pl.Buffered(1) (single-buffered resident weights) not supported on this
        # jax/libtpu combination -> fall back to default double-buffered weights.
        residual, skip = _invoke(False)

    if L_pad != L:
        residual = residual[:, :, :L]
        skip = skip[:, :, :L]
    return residual, skip


def residual_block_ref(x, diffusion_step, conditioner, params, dilation,
                       compute_dtype=None):
    """Pure-JAX reference mirroring the PyTorch forward (NCL layout).

    If compute_dtype is given, matmul operands are cast to it (f32 accumulation),
    mirroring the kernel's MXU dtype, so the comparison isolates real bugs from
    expected bf16 rounding."""
    B, C, L = x.shape

    def cast(a):
        return a.astype(compute_dtype) if compute_dtype is not None else a

    d = diffusion_step @ params["diff_w"].T + params["diff_b"]            # (B, C)
    y = x + d[:, :, None]
    y_pad = jnp.pad(y, ((0, 0), (0, 0), (dilation, dilation)))
    acc = params["dil_b"][None, :, None].astype(jnp.float32)
    for k in range(3):
        acc = acc + jnp.einsum("oi,bil->bol", cast(params["dil_w"][:, :, k]),
                               cast(y_pad[:, :, k * dilation:k * dilation + L]),
                               preferred_element_type=jnp.float32)
    cond_out = jnp.einsum("oi,bil->bol", cast(params["cond_w"][:, :, 0]),
                          cast(conditioner), preferred_element_type=jnp.float32) \
               + params["cond_b"][None, :, None]
    y2 = acc + cond_out
    gate, filt = y2[:, :C], y2[:, C:]
    z = jax.nn.sigmoid(gate) * jnp.tanh(filt)
    out = jnp.einsum("oi,bil->bol", cast(params["out_w"][:, :, 0]), cast(z),
                     preferred_element_type=jnp.float32) \
          + params["out_b"][None, :, None]
    residual, skip = out[:, :C], out[:, C:]
    return (x + residual) / math.sqrt(2.0), skip


def init_params(key, n_mels, residual_channels):
    """Deterministic synthetic params matching the PyTorch module's shapes."""
    C = residual_channels
    ks = jax.random.split(key, 8)
    dil_w = jax.random.normal(ks[0], (2 * C, C, 3), jnp.float32) * math.sqrt(2.0 / (C * 3))
    dil_b = jax.random.normal(ks[1], (2 * C,), jnp.float32) * 0.05
    diff_w = jax.random.normal(ks[2], (C, 512), jnp.float32) * math.sqrt(1.0 / 512)
    diff_b = jax.random.normal(ks[3], (C,), jnp.float32) * 0.05
    cond_w = jax.random.normal(ks[4], (2 * C, n_mels, 1), jnp.float32) * math.sqrt(2.0 / n_mels)
    cond_b = jax.random.normal(ks[5], (2 * C,), jnp.float32) * 0.05
    out_w = jax.random.normal(ks[6], (2 * C, C, 1), jnp.float32) * math.sqrt(2.0 / C)
    out_b = jax.random.normal(ks[7], (2 * C,), jnp.float32) * 0.05
    return dict(dil_w=dil_w, dil_b=dil_b, diff_w=diff_w, diff_b=diff_b,
                cond_w=cond_w, cond_b=cond_b, out_w=out_w, out_b=out_b)


if __name__ == "__main__":
    B, C, M = 2, 4, 8          # batch, residual_channels, n_mels
    key = jax.random.PRNGKey(0)
    k_x, k_d, k_c, k_p = jax.random.split(key, 4)
    diffusion_step = jax.random.normal(k_d, (B, 512), jnp.float32)
    params = init_params(k_p, M, C)

    # 1) Single time tile, strict f32 MXU path, dilation=2.
    L1, dil1 = 16, 2
    x1 = jax.random.normal(k_x, (B, C, L1), jnp.float32)
    c1 = jax.random.normal(k_c, (B, M, L1), jnp.float32)
    r1, s1 = residual_block_pallas(x1, diffusion_step, c1, params, dil1,
                                   compute_dtype=jnp.float32)
    jax.block_until_ready((r1, s1))
    rr1, rs1 = residual_block_ref(x1, diffusion_step, c1, params, dil1)
    assert r1.shape == (B, C, L1) and s1.shape == (B, C, L1)
    assert jnp.allclose(r1, rr1, atol=1e-4, rtol=1e-4)
    assert jnp.allclose(s1, rs1, atol=1e-4, rtol=1e-4)

    # 2) Multi-tile + ragged length (TL=128, nt=3, L_pad=384), dilation=4, strict f32.
    #    Exercises halo windows, edge masking and the padded tail.
    L2, dil2 = 300, 4
    x2 = jax.random.normal(k_x, (B, C, L2), jnp.float32)
    c2 = jax.random.normal(k_c, (B, M, L2), jnp.float32)
    r2, s2 = residual_block_pallas(x2, diffusion_step, c2, params, dil2,
                                   compute_dtype=jnp.float32, time_tile=128)
    jax.block_until_ready((r2, s2))
    rr2, rs2 = residual_block_ref(x2, diffusion_step, c2, params, dil2)
    assert r2.shape == (B, C, L2) and s2.shape == (B, C, L2)
    assert jnp.allclose(r2, rr2, atol=1e-4, rtol=1e-4)
    assert jnp.allclose(s2, rs2, atol=1e-4, rtol=1e-4)

    # 3) Production dtype path: bf16 MXU operands, f32 accumulation; compare against a
    #    dtype-matched reference.
    r3, s3 = residual_block_pallas(x2, diffusion_step, c2, params, dil2,
                                   compute_dtype=jnp.bfloat16, time_tile=128)
    jax.block_until_ready((r3, s3))
    rr3, rs3 = residual_block_ref(x2, diffusion_step, c2, params, dil2,
                                  compute_dtype=jnp.bfloat16)
    assert jnp.allclose(r3, rr3, atol=2e-2, rtol=2e-2)
    assert jnp.allclose(s3, rs3, atol=2e-2, rtol=2e-2)

    print("KERNEL_OK")
</pallas_src>

<mosaic_0001>
module attributes {stable_mosaic.version = 11 : i64} {
  func.func @kernel(%arg0: i32, %arg1: i32, %arg2: memref<1x1x4x20xf32, #tpu.memory_space<vmem>>, %arg3: memref<1x8x16xf32, #tpu.memory_space<vmem>>, %arg4: memref<1x4x1xf32, #tpu.memory_space<vmem>>, %arg5: memref<3x8x4xf32, #tpu.memory_space<vmem>>, %arg6: memref<8x8xf32, #tpu.memory_space<vmem>>, %arg7: memref<8x1xf32, #tpu.memory_space<vmem>>, %arg8: memref<8x4xf32, #tpu.memory_space<vmem>>, %arg9: memref<8x1xf32, #tpu.memory_space<vmem>>, %arg10: memref<1x4x16xf32, #tpu.memory_space<vmem>>, %arg11: memref<1x4x16xf32, #tpu.memory_space<vmem>>) attributes {dimension_semantics = [#tpu.dimension_semantics<parallel>, #tpu.dimension_semantics<parallel>], iteration_bounds = array<i64: 2, 1>, scalar_prefetch = 0 : i64, scratch_operands = 0 : i64, tpu.core_type = #tpu.core_type<tc>, window_params = [{transform_indices = @transform_0, window_bounds = array<i64: 1, 1, 4, 20>}, {transform_indices = @transform_1, window_bounds = array<i64: 1, 8, 16>}, {transform_indices = @transform_2, window_bounds = array<i64: 1, 4, 1>}, {pipeline_mode = #tpu.pipeline_mode<synchronous>, transform_indices = @transform_3, window_bounds = array<i64: 3, 8, 4>}, {pipeline_mode = #tpu.pipeline_mode<synchronous>, transform_indices = @transform_4, window_bounds = array<i64: 8, 8>}, {pipeline_mode = #tpu.pipeline_mode<synchronous>, transform_indices = @transform_5, window_bounds = array<i64: 8, 1>}, {pipeline_mode = #tpu.pipeline_mode<synchronous>, transform_indices = @transform_6, window_bounds = array<i64: 8, 4>}, {pipeline_mode = #tpu.pipeline_mode<synchronous>, transform_indices = @transform_7, window_bounds = array<i64: 8, 1>}, {transform_indices = @transform_8, window_bounds = array<i64: 1, 4, 16>}, {transform_indices = @transform_9, window_bounds = array<i64: 1, 4, 16>}]} {
    %c0 = arith.constant 0 : index
    %c0_0 = arith.constant 0 : index
    %c0_1 = arith.constant 0 : index
    %c0_2 = arith.constant 0 : index
    %0 = vector.load %arg2[%c0, %c0_0, %c0_1, %c0_2] : memref<1x1x4x20xf32, #tpu.memory_space<vmem>>, vector<1x1x4x20xf32>
    %1 = vector.shape_cast %0 : vector<1x1x4x20xf32> to vector<4x20xf32>
    %c0_3 = arith.constant 0 : index
    %c0_4 = arith.constant 0 : index
    %c0_5 = arith.constant 0 : index
    %2 = vector.load %arg4[%c0_3, %c0_4, %c0_5] : memref<1x4x1xf32, #tpu.memory_space<vmem>>, vector<1x4x1xf32>
    %3 = vector.shape_cast %2 : vector<1x4x1xf32> to vector<4x1xf32>
    %4 = tpu.iota {dimensions = array<i32: 1>} : vector<1x20xi32>
    %c16_i32 = arith.constant 16 : i32
    %5 = arith.muli %arg1, %c16_i32 : i32
    %6 = vector.broadcast %5 : i32 to vector<1x20xi32>
    %7 = arith.addi %4, %6 : vector<1x20xi32>
    %c2_i32 = arith.constant 2 : i32
    %8 = vector.broadcast %c2_i32 : i32 to vector<1x20xi32>
    %9 = arith.cmpi sge, %7, %8 : vector<1x20xi32>
    %c18_i32 = arith.constant 18 : i32
    %10 = vector.broadcast %c18_i32 : i32 to vector<1x20xi32>
    %11 = arith.cmpi slt, %7, %10 : vector<1x20xi32>
    %12 = arith.andi %9, %11 : vector<1x20xi1>
    %13 = vector.broadcast %3 : vector<4x1xf32> to vector<4x20xf32>
    %14 = arith.addf %1, %13 : vector<4x20xf32>
    %cst = arith.constant 0.000000e+00 : f32
    %15 = vector.shape_cast %12 : vector<1x20xi1> to vector<1x20xi1>
    %16 = vector.broadcast %15 : vector<1x20xi1> to vector<4x20xi1>
    %17 = vector.broadcast %cst : f32 to vector<4x20xf32>
    %18 = arith.select %16, %14, %17 : vector<4x20xi1>, vector<4x20xf32>
    %c0_6 = arith.constant 0 : index
    %c0_7 = arith.constant 0 : index
    %c0_8 = arith.constant 0 : index
    %19 = vector.load %arg5[%c0_6, %c0_7, %c0_8] : memref<3x8x4xf32, #tpu.memory_space<vmem>>, vector<1x8x4xf32>
    %20 = vector.shape_cast %19 : vector<1x8x4xf32> to vector<8x4xf32>
    %21 = vector.extract_strided_slice %18 {offsets = [0, 0], sizes = [4, 16], strides = [1, 1]} : vector<4x20xf32> to vector<4x16xf32>
    %cst_9 = arith.constant dense<0.000000e+00> : vector<8x16xf32>
    %22 = tpu.matmul %20, %21, %cst_9 {dimension_numbers = #tpu.dot_dimension_numbers<[1], [0], [0], [1], [0, 0, 1, 1], [], []>} : vector<8x4xf32>, vector<4x16xf32>, vector<8x16xf32> -> vector<8x16xf32>
    %c1 = arith.constant 1 : index
    %c0_10 = arith.constant 0 : index
    %c0_11 = arith.constant 0 : index
    %23 = vector.load %arg5[%c1, %c0_10, %c0_11] : memref<3x8x4xf32, #tpu.memory_space<vmem>>, vector<1x8x4xf32>
    %24 = vector.shape_cast %23 : vector<1x8x4xf32> to vector<8x4xf32>
    %25 = vector.extract_strided_slice %18 {offsets = [0, 2], sizes = [4, 16], strides = [1, 1]} : vector<4x20xf32> to vector<4x16xf32>
    %cst_12 = arith.constant dense<0.000000e+00> : vector<8x16xf32>
    %26 = tpu.matmul %24, %25, %cst_12 {dimension_numbers = #tpu.dot_dimension_numbers<[1], [0], [0], [1], [0, 0, 1, 1], [], []>} : vector<8x4xf32>, vector<4x16xf32>, vector<8x16xf32> -> vector<8x16xf32>
    %27 = arith.addf %22, %26 : vector<8x16xf32>
    %c2 = arith.constant 2 : index
    %c0_13 = arith.constant 0 : index
    %c0_14 = arith.constant 0 : index
    %28 = vector.load %arg5[%c2, %c0_13, %c0_14] : memref<3x8x4xf32, #tpu.memory_space<vmem>>, vector<1x8x4xf32>
    %29 = vector.shape_cast %28 : vector<1x8x4xf32> to vector<8x4xf32>
    %30 = vector.extract_strided_slice %18 {offsets = [0, 4], sizes = [4, 16], strides = [1, 1]} : vector<4x20xf32> to vector<4x16xf32>
    %cst_15 = arith.constant dense<0.000000e+00> : vector<8x16xf32>
    %31 = tpu.matmul %29, %30, %cst_15 {dimension_numbers = #tpu.dot_dimension_numbers<[1], [0], [0], [1], [0, 0, 1, 1], [], []>} : vector<8x4xf32>, vector<4x16xf32>, vector<8x16xf32> -> vector<8x16xf32>
    %32 = arith.addf %27, %31 : vector<8x16xf32>
    %c0_16 = arith.constant 0 : index
    %c0_17 = arith.constant 0 : index
    %33 = vector.load %arg6[%c0_16, %c0_17] : memref<8x8xf32, #tpu.memory_space<vmem>>, vector<8x8xf32>
    %c0_18 = arith.constant 0 : index
    %c0_19 = arith.constant 0 : index
    %c0_20 = arith.constant 0 : index
    %34 = vector.load %arg3[%c0_18, %c0_19, %c0_20] : memref<1x8x16xf32, #tpu.memory_space<vmem>>, vector<1x8x16xf32>
    %35 = vector.shape_cast %34 : vector<1x8x16xf32> to vector<8x16xf32>
    %cst_21 = arith.constant dense<0.000000e+00> : vector<8x16xf32>
    %36 = tpu.matmul %33, %35, %cst_21 {dimension_numbers = #tpu.dot_dimension_numbers<[1], [0], [0], [1], [0, 0, 1, 1], [], []>} : vector<8x8xf32>, vector<8x16xf32>, vector<8x16xf32> -> vector<8x16xf32>
    %37 = arith.addf %32, %36 : vector<8x16xf32>
    %c0_22 = arith.constant 0 : index
    %c0_23 = arith.constant 0 : index
    %38 = vector.load %arg7[%c0_22, %c0_23] : memref<8x1xf32, #tpu.memory_space<vmem>>, vector<8x1xf32>
    %39 = vector.broadcast %38 : vector<8x1xf32> to vector<8x16xf32>
    %40 = arith.addf %37, %39 : vector<8x16xf32>
    %41 = vector.extract_strided_slice %40 {offsets = [0, 0], sizes = [4, 16], strides = [1, 1]} : vector<8x16xf32> to vector<4x16xf32>
    %42 = arith.negf %41 : vector<4x16xf32>
    %43 = math.exp %42 : vector<4x16xf32>
    %cst_24 = arith.constant 1.000000e+00 : f32
    %44 = vector.broadcast %cst_24 : f32 to vector<4x16xf32>
    %45 = arith.addf %44, %43 : vector<4x16xf32>
    %46 = arith.divf %44, %45 : vector<4x16xf32>
    %47 = vector.extract_strided_slice %40 {offsets = [4, 0], sizes = [4, 16], strides = [1, 1]} : vector<8x16xf32> to vector<4x16xf32>
    %48 = math.tanh %47 : vector<4x16xf32>
    %49 = arith.mulf %46, %48 : vector<4x16xf32>
    %c0_25 = arith.constant 0 : index
    %c0_26 = arith.constant 0 : index
    %50 = vector.load %arg8[%c0_25, %c0_26] : memref<8x4xf32, #tpu.memory_space<vmem>>, vector<8x4xf32>
    %cst_27 = arith.constant dense<0.000000e+00> : vector<8x16xf32>
    %51 = tpu.matmul %50, %49, %cst_27 {dimension_numbers = #tpu.dot_dimension_numbers<[1], [0], [0], [1], [0, 0, 1, 1], [], []>} : vector<8x4xf32>, vector<4x16xf32>, vector<8x16xf32> -> vector<8x16xf32>
    %c0_28 = arith.constant 0 : index
    %c0_29 = arith.constant 0 : index
    %52 = vector.load %arg9[%c0_28, %c0_29] : memref<8x1xf32, #tpu.memory_space<vmem>>, vector<8x1xf32>
    %53 = vector.broadcast %52 : vector<8x1xf32> to vector<8x16xf32>
    %54 = arith.addf %51, %53 : vector<8x16xf32>
    %55 = vector.extract_strided_slice %1 {offsets = [0, 2], sizes = [4, 16], strides = [1, 1]} : vector<4x20xf32> to vector<4x16xf32>
    %56 = vector.extract_strided_slice %54 {offsets = [0, 0], sizes = [4, 16], strides = [1, 1]} : vector<8x16xf32> to vector<4x16xf32>
    %57 = arith.addf %55, %56 : vector<4x16xf32>
    %cst_30 = arith.constant 0.707106769 : f32
    %58 = vector.broadcast %cst_30 : f32 to vector<4x16xf32>
    %59 = arith.mulf %57, %58 : vector<4x16xf32>
    %c0_31 = arith.constant 0 : index
    %c0_32 = arith.constant 0 : index
    %c0_33 = arith.constant 0 : index
    %60 = vector.load %arg10[%c0_31, %c0_32, %c0_33] : memref<1x4x16xf32, #tpu.memory_space<vmem>>, vector<1x4x16xf32>
    %61 = vector.shape_cast %60 : vector<1x4x16xf32> to vector<4x16xf32>
    %62 = vector.shape_cast %59 : vector<4x16xf32> to vector<1x4x16xf32>
    tpu.vector_store %arg10[%c0_31, %c0_32, %c0_33], %62 {strides = array<i32>} : memref<1x4x16xf32, #tpu.memory_space<vmem>>, vector<1x4x16xf32>,
    %63 = vector.extract_strided_slice %54 {offsets = [4, 0], sizes = [4, 16], strides = [1, 1]} : vector<8x16xf32> to vector<4x16xf32>
    %c0_34 = arith.constant 0 : index
    %c0_35 = arith.constant 0 : index
    %c0_36 = arith.constant 0 : index
    %64 = vector.load %arg11[%c0_34, %c0_35, %c0_36] : memref<1x4x16xf32, #tpu.memory_space<vmem>>, vector<1x4x16xf32>
    %65 = vector.shape_cast %64 : vector<1x4x16xf32> to vector<4x16xf32>
    %66 = vector.shape_cast %63 : vector<4x16xf32> to vector<1x4x16xf32>
    tpu.vector_store %arg11[%c0_34, %c0_35, %c0_36], %66 {strides = array<i32>} : memref<1x4x16xf32, #tpu.memory_space<vmem>>, vector<1x4x16xf32>,
    return
  }
  func.func @transform_0(%arg0: i32, %arg1: i32) -> (i32, i32, i32, i32) {
    %c0_i32 = arith.constant 0 : i32
    %c0_i32_0 = arith.constant 0 : i32
    %c0_i32_1 = arith.constant 0 : i32
    return %arg0, %arg1, %c0_i32, %c0_i32_0 : i32, i32, i32, i32
  }
  func.func @transform_1(%arg0: i32, %arg1: i32) -> (i32, i32, i32) {
    %c0_i32 = arith.constant 0 : i32
    %c0_i32_0 = arith.constant 0 : i32
    return %arg0, %c0_i32, %arg1 : i32, i32, i32
  }
  func.func @transform_2(%arg0: i32, %arg1: i32) -> (i32, i32, i32) {
    %c0_i32 = arith.constant 0 : i32
    %c0_i32_0 = arith.constant 0 : i32
    %c0_i32_1 = arith.constant 0 : i32
    return %arg0, %c0_i32, %c0_i32_0 : i32, i32, i32
  }
  func.func @transform_3(%arg0: i32, %arg1: i32) -> (i32, i32, i32) {
    %c0_i32 = arith.constant 0 : i32
    %c0_i32_0 = arith.constant 0 : i32
    %c0_i32_1 = arith.constant 0 : i32
    %c0_i32_2 = arith.constant 0 : i32
    return %c0_i32, %c0_i32_0, %c0_i32_1 : i32, i32, i32
  }
  func.func @transform_4(%arg0: i32, %arg1: i32) -> (i32, i32) {
    %c0_i32 = arith.constant 0 : i32
    %c0_i32_0 = arith.constant 0 : i32
    %c0_i32_1 = arith.constant 0 : i32
    return %c0_i32, %c0_i32_0 : i32, i32
  }
  func.func @transform_5(%arg0: i32, %arg1: i32) -> (i32, i32) {
    %c0_i32 = arith.constant 0 : i32
    %c0_i32_0 = arith.constant 0 : i32
    %c0_i32_1 = arith.constant 0 : i32
    return %c0_i32, %c0_i32_0 : i32, i32
  }
  func.func @transform_6(%arg0: i32, %arg1: i32) -> (i32, i32) {
    %c0_i32 = arith.constant 0 : i32
    %c0_i32_0 = arith.constant 0 : i32
    %c0_i32_1 = arith.constant 0 : i32
    return %c0_i32, %c0_i32_0 : i32, i32
  }
  func.func @transform_7(%arg0: i32, %arg1: i32) -> (i32, i32) {
    %c0_i32 = arith.constant 0 : i32
    %c0_i32_0 = arith.constant 0 : i32
    %c0_i32_1 = arith.constant 0 : i32
    return %c0_i32, %c0_i32_0 : i32, i32
  }
  func.func @transform_8(%arg0: i32, %arg1: i32) -> (i32, i32, i32) {
    %c0_i32 = arith.constant 0 : i32
    %c0_i32_0 = arith.constant 0 : i32
    return %arg0, %c0_i32, %arg1 : i32, i32, i32
  }
  func.func @transform_9(%arg0: i32, %arg1: i32) -> (i32, i32, i32) {
    %c0_i32 = arith.constant 0 : i32
    %c0_i32_0 = arith.constant 0 : i32
    return %arg0, %c0_i32, %arg1 : i32, i32, i32
  }
}

module attributes {stable_mosaic.version = 11 : i64} {
  func.func @kernel(%arg0: i32, %arg1: i32, %arg2: memref<1x1x4x20xf32, #tpu.memory_space<vmem>>, %arg3: memref<1x8x16xf32, #tpu.memory_space<vmem>>, %arg4: memref<1x4x1xf32, #tpu.memory_space<vmem>>, %arg5: memref<3x8x4xf32, #tpu.memory_space<vmem>>, %arg6: memref<8x8xf32, #tpu.memory_space<vmem>>, %arg7: memref<8x1xf32, #tpu.memory_space<vmem>>, %arg8: memref<8x4xf32, #tpu.memory_space<vmem>>, %arg9: memref<8x1xf32, #tpu.memory_space<vmem>>, %arg10: memref<1x4x16xf32, #tpu.memory_space<vmem>>, %arg11: memref<1x4x16xf32, #tpu.memory_space<vmem>>) attributes {dimension_semantics = [#tpu.dimension_semantics<parallel>, #tpu.dimension_semantics<parallel>], iteration_bounds = array<i64: 2, 1>, scalar_prefetch = 0 : i64, scratch_operands = 0 : i64, tpu.core_type = #tpu.core_type<tc>, window_params = [{transform_indices = @transform_0, window_bounds = array<i64: 1, 1, 4, 20>}, {transform_indices = @transform_1, window_bounds = array<i64: 1, 8, 16>}, {transform_indices = @transform_2, window_bounds = array<i64: 1, 4, 1>}, {pipeline_mode = #tpu.pipeline_mode<synchronous>, transform_indices = @transform_3, window_bounds = array<i64: 3, 8, 4>}, {pipeline_mode = #tpu.pipeline_mode<synchronous>, transform_indices = @transform_4, window_bounds = array<i64: 8, 8>}, {pipeline_mode = #tpu.pipeline_mode<synchronous>, transform_indices = @transform_5, window_bounds = array<i64: 8, 1>}, {pipeline_mode = #tpu.pipeline_mode<synchronous>, transform_indices = @transform_6, window_bounds = array<i64: 8, 4>}, {pipeline_mode = #tpu.pipeline_mode<synchronous>, transform_indices = @transform_7, window_bounds = array<i64: 8, 1>}, {transform_indices = @transform_8, window_bounds = array<i64: 1, 4, 16>}, {transform_indices = @transform_9, window_bounds = array<i64: 1, 4, 16>}]} {
    %c0 = arith.constant 0 : index
    %c0_0 = arith.constant 0 : index
    %c0_1 = arith.constant 0 : index
    %c0_2 = arith.constant 0 : index
    %0 = vector.load %arg2[%c0, %c0_0, %c0_1, %c0_2] : memref<1x1x4x20xf32, #tpu.memory_space<vmem>>, vector<1x1x4x20xf32>
    %1 = vector.shape_cast %0 : vector<1x1x4x20xf32> to vector<4x20xf32>
    %c0_3 = arith.constant 0 : index
    %c0_4 = arith.constant 0 : index
    %c0_5 = arith.constant 0 : index
    %2 = vector.load %arg4[%c0_3, %c0_4, %c0_5] : memref<1x4x1xf32, #tpu.memory_space<vmem>>, vector<1x4x1xf32>
    %3 = vector.shape_cast %2 : vector<1x4x1xf32> to vector<4x1xf32>
    %4 = tpu.iota {dimensions = array<i32: 1>} : vector<1x20xi32>
    %c16_i32 = arith.constant 16 : i32
    %5 = arith.muli %arg1, %c16_i32 : i32
    %6 = vector.broadcast %5 : i32 to vector<1x20xi32>
    %7 = arith.addi %4, %6 : vector<1x20xi32>
    %c2_i32 = arith.constant 2 : i32
    %8 = vector.broadcast %c2_i32 : i32 to vector<1x20xi32>
    %9 = arith.cmpi sge, %7, %8 : vector<1x20xi32>
    %c18_i32 = arith.constant 18 : i32
    %10 = vector.broadcast %c18_i32 : i32 to vector<1x20xi32>
    %11 = arith.cmpi slt, %7, %10 : vector<1x20xi32>
    %12 = arith.andi %9, %11 : vector<1x20xi1>
    %13 = vector.broadcast %3 : vector<4x1xf32> to vector<4x20xf32>
    %14 = arith.addf %1, %13 : vector<4x20xf32>
    %cst = arith.constant 0.000000e+00 : f32
    %15 = vector.shape_cast %12 : vector<1x20xi1> to vector<1x20xi1>
    %16 = vector.broadcast %15 : vector<1x20xi1> to vector<4x20xi1>
    %17 = vector.broadcast %cst : f32 to vector<4x20xf32>
    %18 = arith.select %16, %14, %17 : vector<4x20xi1>, vector<4x20xf32>
    %c0_6 = arith.constant 0 : index
    %c0_7 = arith.constant 0 : index
    %c0_8 = arith.constant 0 : index
    %19 = vector.load %arg5[%c0_6, %c0_7, %c0_8] : memref<3x8x4xf32, #tpu.memory_space<vmem>>, vector<1x8x4xf32>
    %20 = vector.shape_cast %19 : vector<1x8x4xf32> to vector<8x4xf32>
    %21 = vector.extract_strided_slice %18 {offsets = [0, 0], sizes = [4, 16], strides = [1, 1]} : vector<4x20xf32> to vector<4x16xf32>
    %cst_9 = arith.constant dense<0.000000e+00> : vector<8x16xf32>
    %22 = tpu.matmul %20, %21, %cst_9 {dimension_numbers = #tpu.dot_dimension_numbers<[1], [0], [0], [1], [0, 0, 1, 1], [], []>} : vector<8x4xf32>, vector<4x16xf32>, vector<8x16xf32> -> vector<8x16xf32>
    %c1 = arith.constant 1 : index
    %c0_10 = arith.constant 0 : index
    %c0_11 = arith.constant 0 : index
    %23 = vector.load %arg5[%c1, %c0_10, %c0_11] : memref<3x8x4xf32, #tpu.memory_space<vmem>>, vector<1x8x4xf32>
    %24 = vector.shape_cast %23 : vector<1x8x4xf32> to vector<8x4xf32>
    %25 = vector.extract_strided_slice %18 {offsets = [0, 2], sizes = [4, 16], strides = [1, 1]} : vector<4x20xf32> to vector<4x16xf32>
    %cst_12 = arith.constant dense<0.000000e+00> : vector<8x16xf32>
    %26 = tpu.matmul %24, %25, %cst_12 {dimension_numbers = #tpu.dot_dimension_numbers<[1], [0], [0], [1], [0, 0, 1, 1], [], []>} : vector<8x4xf32>, vector<4x16xf32>, vector<8x16xf32> -> vector<8x16xf32>
    %27 = arith.addf %22, %26 : vector<8x16xf32>
    %c2 = arith.constant 2 : index
    %c0_13 = arith.constant 0 : index
    %c0_14 = arith.constant 0 : index
    %28 = vector.load %arg5[%c2, %c0_13, %c0_14] : memref<3x8x4xf32, #tpu.memory_space<vmem>>, vector<1x8x4xf32>
    %29 = vector.shape_cast %28 : vector<1x8x4xf32> to vector<8x4xf32>
    %30 = vector.extract_strided_slice %18 {offsets = [0, 4], sizes = [4, 16], strides = [1, 1]} : vector<4x20xf32> to vector<4x16xf32>
    %cst_15 = arith.constant dense<0.000000e+00> : vector<8x16xf32>
    %31 = tpu.matmul %29, %30, %cst_15 {dimension_numbers = #tpu.dot_dimension_numbers<[1], [0], [0], [1], [0, 0, 1, 1], [], []>} : vector<8x4xf32>, vector<4x16xf32>, vector<8x16xf32> -> vector<8x16xf32>
    %32 = arith.addf %27, %31 : vector<8x16xf32>
    %c0_16 = arith.constant 0 : index
    %c0_17 = arith.constant 0 : index
    %33 = vector.load %arg6[%c0_16, %c0_17] : memref<8x8xf32, #tpu.memory_space<vmem>>, vector<8x8xf32>
    %c0_18 = arith.constant 0 : index
    %c0_19 = arith.constant 0 : index
    %c0_20 = arith.constant 0 : index
    %34 = vector.load %arg3[%c0_18, %c0_19, %c0_20] : memref<1x8x16xf32, #tpu.memory_space<vmem>>, vector<1x8x16xf32>
    %35 = vector.shape_cast %34 : vector<1x8x16xf32> to vector<8x16xf32>
    %cst_21 = arith.constant dense<0.000000e+00> : vector<8x16xf32>
    %36 = tpu.matmul %33, %35, %cst_21 {dimension_numbers = #tpu.dot_dimension_numbers<[1], [0], [0], [1], [0, 0, 1, 1], [], []>} : vector<8x8xf32>, vector<8x16xf32>, vector<8x16xf32> -> vector<8x16xf32>
    %37 = arith.addf %32, %36 : vector<8x16xf32>
    %c0_22 = arith.constant 0 : index
    %c0_23 = arith.constant 0 : index
    %38 = vector.load %arg7[%c0_22, %c0_23] : memref<8x1xf32, #tpu.memory_space<vmem>>, vector<8x1xf32>
    %39 = vector.broadcast %38 : vector<8x1xf32> to vector<8x16xf32>
    %40 = arith.addf %37, %39 : vector<8x16xf32>
    %41 = vector.extract_strided_slice %40 {offsets = [0, 0], sizes = [4, 16], strides = [1, 1]} : vector<8x16xf32> to vector<4x16xf32>
    %42 = arith.negf %41 : vector<4x16xf32>
    %43 = math.exp %42 : vector<4x16xf32>
    %cst_24 = arith.constant 1.000000e+00 : f32
    %44 = vector.broadcast %cst_24 : f32 to vector<4x16xf32>
    %45 = arith.addf %44, %43 : vector<4x16xf32>
    %46 = arith.divf %44, %45 : vector<4x16xf32>
    %47 = vector.extract_strided_slice %40 {offsets = [4, 0], sizes = [4, 16], strides = [1, 1]} : vector<8x16xf32> to vector<4x16xf32>
    %48 = math.tanh %47 : vector<4x16xf32>
    %49 = arith.mulf %46, %48 : vector<4x16xf32>
    %c0_25 = arith.constant 0 : index
    %c0_26 = arith.constant 0 : index
    %50 = vector.load %arg8[%c0_25, %c0_26] : memref<8x4xf32, #tpu.memory_space<vmem>>, vector<8x4xf32>
    %cst_27 = arith.constant dense<0.000000e+00> : vector<8x16xf32>
    %51 = tpu.matmul %50, %49, %cst_27 {dimension_numbers = #tpu.dot_dimension_numbers<[1], [0], [0], [1], [0, 0, 1, 1], [], []>} : vector<8x4xf32>, vector<4x16xf32>, vector<8x16xf32> -> vector<8x16xf32>
    %c0_28 = arith.constant 0 : index
    %c0_29 = arith.constant 0 : index
    %52 = vector.load %arg9[%c0_28, %c0_29] : memref<8x1xf32, #tpu.memory_space<vmem>>, vector<8x1xf32>
    %53 = vector.broadcast %52 : vector<8x1xf32> to vector<8x16xf32>
    %54 = arith.addf %51, %53 : vector<8x16xf32>
    %55 = vector.extract_strided_slice %1 {offsets = [0, 2], sizes = [4, 16], strides = [1, 1]} : vector<4x20xf32> to vector<4x16xf32>
    %56 = vector.extract_strided_slice %54 {offsets = [0, 0], sizes = [4, 16], strides = [1, 1]} : vector<8x16xf32> to vector<4x16xf32>
    %57 = arith.addf %55, %56 : vector<4x16xf32>
    %cst_30 = arith.constant 0.707106769 : f32
    %58 = vector.broadcast %cst_30 : f32 to vector<4x16xf32>
    %59 = arith.mulf %57, %58 : vector<4x16xf32>
    %c0_31 = arith.constant 0 : index
    %c0_32 = arith.constant 0 : index
    %c0_33 = arith.constant 0 : index
    %60 = vector.load %arg10[%c0_31, %c0_32, %c0_33] : memref<1x4x16xf32, #tpu.memory_space<vmem>>, vector<1x4x16xf32>
    %61 = vector.shape_cast %60 : vector<1x4x16xf32> to vector<4x16xf32>
    %62 = vector.shape_cast %59 : vector<4x16xf32> to vector<1x4x16xf32>
    tpu.vector_store %arg10[%c0_31, %c0_32, %c0_33], %62 {strides = array<i32>} : memref<1x4x16xf32, #tpu.memory_space<vmem>>, vector<1x4x16xf32>,
    %63 = vector.extract_strided_slice %54 {offsets = [4, 0], sizes = [4, 16], strides = [1, 1]} : vector<8x16xf32> to vector<4x16xf32>
    %c0_34 = arith.constant 0 : index
    %c0_35 = arith.constant 0 : index
    %c0_36 = arith.constant 0 : index
    %64 = vector.load %arg11[%c0_34, %c0_35, %c0_36] : memref<1x4x16xf32, #tpu.memory_space<vmem>>, vector<1x4x16xf32>
    %65 = vector.shape_cast %64 : vector<1x4x16xf32> to vector<4x16xf32>
    %66 = vector.shape_cast %63 : vector<4x16xf32> to vector<1x4x16xf32>
    tpu.vector_store %arg11[%c0_34, %c0_35, %c0_36], %66 {strides = array<i32>} : memref<1x4x16xf32, #tpu.memory_space<vmem>>, vector<1x4x16xf32>,
    return
  }
  func.func @transform_0(%arg0: i32, %arg1: i32) -> (i32, i32, i32, i32) {
    %c0_i32 = arith.constant 0 : i32
    %c0_i32_0 = arith.constant 0 : i32
    %c0_i32_1 = arith.constant 0 : i32
    return %arg0, %arg1, %c0_i32, %c0_i32_0 : i32, i32, i32, i32
  }
  func.func @transform_1(%arg0: i32, %arg1: i32) -> (i32, i32, i32) {
    %c0_i32 = arith.constant 0 : i32
    %c0_i32_0 = arith.constant 0 : i32
    return %arg0, %c0_i32, %arg1 : i32, i32, i32
  }
  func.func @transform_2(%arg0: i32, %arg1: i32) -> (i32, i32, i32) {
    %c0_i32 = arith.constant 0 : i32
    %c0_i32_0 = arith.constant 0 : i32
    %c0_i32_1 = arith.constant 0 : i32
    return %arg0, %c0_i32, %c0_i32_0 : i32, i32, i32
  }
  func.func @transform_3(%arg0: i32, %arg1: i32) -> (i32, i32, i32) {
    %c0_i32 = arith.constant 0 : i32
    %c0_i32_0 = arith.constant 0 : i32
    %c0_i32_1 = arith.constant 0 : i32
    %c0_i32_2 = arith.constant 0 : i32
    return %c0_i32, %c0_i32_0, %c0_i32_1 : i32, i32, i32
  }
  func.func @transform_4(%arg0: i32, %arg1: i32) -> (i32, i32) {
    %c0_i32 = arith.constant 0 : i32
    %c0_i32_0 = arith.constant 0 : i32
    %c0_i32_1 = arith.constant 0 : i32
    return %c0_i32, %c0_i32_0 : i32, i32
  }
  func.func @transform_5(%arg0: i32, %arg1: i32) -> (i32, i32) {
    %c0_i32 = arith.constant 0 : i32
    %c0_i32_0 = arith.constant 0 : i32
    %c0_i32_1 = arith.constant 0 : i32
    return %c0_i32, %c0_i32_0 : i32, i32
  }
  func.func @transform_6(%arg0: i32, %arg1: i32) -> (i32, i32) {
    %c0_i32 = arith.constant 0 : i32
    %c0_i32_0 = arith.constant 0 : i32
    %c0_i32_1 = arith.constant 0 : i32
    return %c0_i32, %c0_i32_0 : i32, i32
  }
  func.func @transform_7(%arg0: i32, %arg1: i32) -> (i32, i32) {
    %c0_i32 = arith.constant 0 : i32
    %c0_i32_0 = arith.constant 0 : i32
    %c0_i32_1 = arith.constant 0 : i32
    return %c0_i32, %c0_i32_0 : i32, i32
  }
  func.func @transform_8(%arg0: i32, %arg1: i32) -> (i32, i32, i32) {
    %c0_i32 = arith.constant 0 : i32
    %c0_i32_0 = arith.constant 0 : i32
    return %arg0, %c0_i32, %arg1 : i32, i32, i32
  }
  func.func @transform_9(%arg0: i32, %arg1: i32) -> (i32, i32, i32) {
    %c0_i32 = arith.constant 0 : i32
    %c0_i32_0 = arith.constant 0 : i32
    return %arg0, %c0_i32, %arg1 : i32, i32, i32
  }
}

</mosaic_0001>

<llo_original>
// kernel: tpu_custom_call.1
$region0: #{tpu_custom_call.1}
  #allocation0 [shape = 'u32[]', space=smem, size = 0x4, offset = 0x4, fixed_abs, tag = 'smem constant byte address 0x4 - core index']
  #allocation1 [shape = 'u32[144,128]{1,0:T(1,128)}', space=vmem, size = 0x12000, scoped, tag = 'internal scratch']
  %s0 = inlined_call_operand.vmem [shape: f32[2,1,4,20], index: 0, kind: input, shape index: {}]
  %s1 = inlined_call_operand.vmem [shape: f32[2,8,16], index: 1, kind: input, shape index: {}]
  %s2 = inlined_call_operand.vmem [shape: f32[2,4,1], index: 2, kind: input, shape index: {}]
  %s3 = inlined_call_operand.vmem [shape: f32[3,8,4], index: 3, kind: input, shape index: {}]
  %s4 = inlined_call_operand.vmem [shape: f32[8,8], index: 4, kind: input, shape index: {}]
  %s5 = inlined_call_operand.vmem [shape: f32[8,1], index: 5, kind: input, shape index: {}]
  %s6 = inlined_call_operand.vmem [shape: f32[8,4], index: 6, kind: input, shape index: {}]
  %s7 = inlined_call_operand.vmem [shape: f32[8,1], index: 7, kind: input, shape index: {}]
  %s8 = inlined_call_operand.hbm [shape: f32[2,4,16], index: 8, kind: output, shape index: {0}]
  %s9 = inlined_call_operand.hbm [shape: f32[2,4,16], index: 9, kind: output, shape index: {1}]
  %10 = xla_tuple %s8, %s9
  %s11 = sld [smem:[#allocation0]]
  $region73: #{tpu_custom_call.1} parent=0
    _
  %s13 = ssub.s32 1, %s11
  %s14 = scalar_select 0, %s13, %s11
  $region1: #{tpu_custom_call.1} parent=0
    #allocation2 [shape = 'u8[4096]{0}', space=vmem, size = 0x1000, scoped, tag = 'output window, operand 0']
    #allocation3 [shape = 's32[2]{0}', space=sflag, size = 0x8, scoped, tag = 'scoped memory for tpu_custom_call.1']
    #allocation4 [shape = 'u8[4096]{0}', space=vmem, size = 0x1000, scoped, tag = 'output window, operand 1']
    #allocation5 [shape = 's32[2]{0}', space=sflag, size = 0x8, scoped, tag = 'scoped memory for tpu_custom_call.1']
    %15 = vsyncpa [#allocation3], 0
    %s16 = scalar_lea.sflag [#allocation3], 1
    %17 = vsyncpa %s16, 0
    %18 = vsyncpa [#allocation5], 0
    %s19 = scalar_lea.sflag [#allocation5], 1
    %20 = vsyncpa %s19, 0
    loop: start=0, step=1, limit=4
    $region2: #{tpu_custom_call.1} parent=1 // loop_pre_header
      _
    $region3: #{tpu_custom_call.1} parent=1 // loop_header
      %s22 = sphi 0, %s26
      %p23 = scmp.ge.s32.totalorder %s22, 4
      %s29 = sphi 0, %s41
      %s30 = sphi 0, %s37
      %s31 = sphi 0, %s29
      %s32 = sphi 0, %s30
      %s33 = sphi 0, %s31
      %s34 = sphi 0, %s32
      %s46 = sphi 0, %s48
      %s49 = sphi 0, %s46
      %s50 = sphi 0, %s49
      %s66 = sphi 0, %s50
      %s74 = sphi 0, %s76
      %s77 = sphi 0, %s74
      %s78 = sphi 0, %s77
      %s94 = sphi 0, %s78
      %s100 = sphi 0, %s102
      %s103 = sphi 0, %s100
      %s104 = sphi 0, %s103
      %s120 = sphi 0, %s104
      %s124 = sphi 0, %s124
      %s126 = sphi 0, %s124
      %s127 = sphi 0, %s126
      %s141 = sphi 0, %s127
      %s145 = sphi 0, %s145
      %s147 = sphi 0, %s145
      %s148 = sphi 0, %s147
      %s162 = sphi 0, %s148
      %s166 = sphi 0, %s166
      %s168 = sphi 0, %s166
      %s169 = sphi 0, %s168
      %s183 = sphi 0, %s169
      %s187 = sphi 0, %s187
      %s189 = sphi 0, %s187
      %s190 = sphi 0, %s189
      %s204 = sphi 0, %s190
      %s208 = sphi 0, %s208
      %s210 = sphi 0, %s208
      %s211 = sphi 0, %s210
      %s225 = sphi 0, %s211
      %s233 = sphi 0, %s235
      %s236 = sphi 0, %s233
      %s237 = sphi 0, %s236
      %s253 = sphi 0, %s237
      %s261 = sphi 0, %s263
      %s264 = sphi 0, %s261
      %s265 = sphi 0, %s264
      %s281 = sphi 0, %s265
    $region4: #{tpu_custom_call.1} parent=1 // loop_header_branch
      %25 = sbr.rel (%p23) target = $region8
    $region5: #{tpu_custom_call.1} parent=1 // loop_body
      %s27 = ssub.s32 %s22, 1
      %s28 = ssub.s32 %s22, 2
      %s35 = sadd.s32 1, %s30
      %p36 = scmp.ge.s32.totalorder %s35, 1
      %s37 = scalar_select %p36, 0, %s35
      %s38 = sadd.s32 1, %s29
      %s39 = scalar_select %p36, %s38, %s29
      %p40 = scmp.ge.s32.totalorder %s39, 2
      %s41 = scalar_select %p40, 0, %s39
      %s42 = ssub.s32 %s29, %s41
      %s43 = ssub.s32 %s30, %s37
      %s44 = sor.u32 %s42, %s43
      %p45 = scmp.eq.s32.totalorder %s44, 0
      %s47 = sadd.s32 %s46, 1
      %s48 = scalar_select %p45, %s46, %s47
      %p51 = pneg %p45
      %p52 = scmp.eq.s32.totalorder %s22, 1
      %p53 = por %p51, %p52
      %p54 = scmp.ne.s32.totalorder %s46, %s49
      %p55 = scmp.eq.s32.totalorder %s22, 0
      %p56 = por %p54, %p55
      %p57 = scmp.ne.s32.totalorder %s46, %s49
      %p58 = scmp.eq.s32.totalorder %s27, 1
      %p59 = por %p57, %p58
      %p60 = scmp.ne.s32.totalorder %s49, %s50
      %p61 = scmp.eq.s32.totalorder %s27, 0
      %p62 = por %p60, %p61
      %p63 = scmp.ne.s32.totalorder %s49, %s50
      %p64 = scmp.eq.s32.totalorder %s28, 1
      %p65 = por %p63, %p64
      %p67 = scmp.ne.s32.totalorder %s50, %s66
      %p68 = scmp.eq.s32.totalorder %s28, 0
      %p69 = por %p67, %p68
      %s70 = ssub.s32 %s29, %s41
      %s71 = ssub.s32 %s30, %s37
      %s72 = sor.u32 %s70, %s71
      %p73 = scmp.eq.s32.totalorder %s72, 0
      %s75 = sadd.s32 %s74, 1
      %s76 = scalar_select %p73, %s74, %s75
      %p79 = pneg %p73
      %p80 = scmp.eq.s32.totalorder %s22, 1
      %p81 = por %p79, %p80
      %p82 = scmp.ne.s32.totalorder %s74, %s77
      %p83 = scmp.eq.s32.totalorder %s22, 0
      %p84 = por %p82, %p83
      %p85 = scmp.ne.s32.totalorder %s74, %s77
      %p86 = scmp.eq.s32.totalorder %s27, 1
      %p87 = por %p85, %p86
      %p88 = scmp.ne.s32.totalorder %s77, %s78
      %p89 = scmp.eq.s32.totalorder %s27, 0
      %p90 = por %p88, %p89
      %p91 = scmp.ne.s32.totalorder %s77, %s78
      %p92 = scmp.eq.s32.totalorder %s28, 1
      %p93 = por %p91, %p92
      %p95 = scmp.ne.s32.totalorder %s78, %s94
      %p96 = scmp.eq.s32.totalorder %s28, 0
      %p97 = por %p95, %p96
      %s98 = ssub.s32 %s29, %s41
      %p99 = scmp.eq.s32.totalorder %s98, 0
      %s101 = sadd.s32 %s100, 1
      %s102 = scalar_select %p99, %s100, %s101
      %p105 = pneg %p99
      %p106 = scmp.eq.s32.totalorder %s22, 1
      %p107 = por %p105, %p106
      %p108 = scmp.ne.s32.totalorder %s100, %s103
      %p109 = scmp.eq.s32.totalorder %s22, 0
      %p110 = por %p108, %p109
      %p111 = scmp.ne.s32.totalorder %s100, %s103
      %p112 = scmp.eq.s32.totalorder %s27, 1
      %p113 = por %p111, %p112
      %p114 = scmp.ne.s32.totalorder %s103, %s104
      %p115 = scmp.eq.s32.totalorder %s27, 0
      %p116 = por %p114, %p115
      %p117 = scmp.ne.s32.totalorder %s103, %s104
      %p118 = scmp.eq.s32.totalorder %s28, 1
      %p119 = por %p117, %p118
      %p121 = scmp.ne.s32.totalorder %s104, %s120
      %p122 = scmp.eq.s32.totalorder %s28, 0
      %p123 = por %p121, %p122
      %s125 = sadd.s32 %s124, 1
      %p128 = scmp.eq.s32.totalorder %s22, 1
      %p129 = scmp.ne.s32.totalorder %s124, %s126
      %p130 = scmp.eq.s32.totalorder %s22, 0
      %p131 = por %p129, %p130
      %p132 = scmp.ne.s32.totalorder %s124, %s126
      %p133 = scmp.eq.s32.totalorder %s27, 1
      %p134 = por %p132, %p133
      %p135 = scmp.ne.s32.totalorder %s126, %s127
      %p136 = scmp.eq.s32.totalorder %s27, 0
      %p137 = por %p135, %p136
      %p138 = scmp.ne.s32.totalorder %s126, %s127
      %p139 = scmp.eq.s32.totalorder %s28, 1
      %p140 = por %p138, %p139
      %p142 = scmp.ne.s32.totalorder %s127, %s141
      %p143 = scmp.eq.s32.totalorder %s28, 0
      %p144 = por %p142, %p143
      %s146 = sadd.s32 %s145, 1
      %p149 = scmp.eq.s32.totalorder %s22, 1
      %p150 = scmp.ne.s32.totalorder %s145, %s147
      %p151 = scmp.eq.s32.totalorder %s22, 0
      %p152 = por %p150, %p151
      %p153 = scmp.ne.s32.totalorder %s145, %s147
      %p154 = scmp.eq.s32.totalorder %s27, 1
      %p155 = por %p153, %p154
      %p156 = scmp.ne.s32.totalorder %s147, %s148
      %p157 = scmp.eq.s32.totalorder %s27, 0
      %p158 = por %p156, %p157
      %p159 = scmp.ne.s32.totalorder %s147, %s148
      %p160 = scmp.eq.s32.totalorder %s28, 1
      %p161 = por %p159, %p160
      %p163 = scmp.ne.s32.totalorder %s148, %s162
      %p164 = scmp.eq.s32.totalorder %s28, 0
      %p165 = por %p163, %p164
      %s167 = sadd.s32 %s166, 1
      %p170 = scmp.eq.s32.totalorder %s22, 1
      %p171 = scmp.ne.s32.totalorder %s166, %s168
      %p172 = scmp.eq.s32.totalorder %s22, 0
      %p173 = por %p171, %p172
      %p174 = scmp.ne.s32.totalorder %s166, %s168
      %p175 = scmp.eq.s32.totalorder %s27, 1
      %p176 = por %p174, %p175
      %p177 = scmp.ne.s32.totalorder %s168, %s169
      %p178 = scmp.eq.s32.totalorder %s27, 0
      %p179 = por %p177, %p178
      %p180 = scmp.ne.s32.totalorder %s168, %s169
      %p181 = scmp.eq.s32.totalorder %s28, 1
      %p182 = por %p180, %p181
      %p184 = scmp.ne.s32.totalorder %s169, %s183
      %p185 = scmp.eq.s32.totalorder %s28, 0
      %p186 = por %p184, %p185
      %s188 = sadd.s32 %s187, 1
      %p191 = scmp.eq.s32.totalorder %s22, 1
      %p192 = scmp.ne.s32.totalorder %s187, %s189
      %p193 = scmp.eq.s32.totalorder %s22, 0
      %p194 = por %p192, %p193
      %p195 = scmp.ne.s32.totalorder %s187, %s189
      %p196 = scmp.eq.s32.totalorder %s27, 1
      %p197 = por %p195, %p196
      %p198 = scmp.ne.s32.totalorder %s189, %s190
      %p199 = scmp.eq.s32.totalorder %s27, 0
      %p200 = por %p198, %p199
      %p201 = scmp.ne.s32.totalorder %s189, %s190
      %p202 = scmp.eq.s32.totalorder %s28, 1
      %p203 = por %p201, %p202
      %p205 = scmp.ne.s32.totalorder %s190, %s204
      %p206 = scmp.eq.s32.totalorder %s28, 0
      %p207 = por %p205, %p206
      %s209 = sadd.s32 %s208, 1
      %p212 = scmp.eq.s32.totalorder %s22, 1
      %p213 = scmp.ne.s32.totalorder %s208, %s210
      %p214 = scmp.eq.s32.totalorder %s22, 0
      %p215 = por %p213, %p214
      %p216 = scmp.ne.s32.totalorder %s208, %s210
      %p217 = scmp.eq.s32.totalorder %s27, 1
      %p218 = por %p216, %p217
      %p219 = scmp.ne.s32.totalorder %s210, %s211
      %p220 = scmp.eq.s32.totalorder %s27, 0
      %p221 = por %p219, %p220
      %p222 = scmp.ne.s32.totalorder %s210, %s211
      %p223 = scmp.eq.s32.totalorder %s28, 1
      %p224 = por %p222, %p223
      %p226 = scmp.ne.s32.totalorder %s211, %s225
      %p227 = scmp.eq.s32.totalorder %s28, 0
      %p228 = por %p226, %p227
      %s229 = ssub.s32 %s29, %s41
      %s230 = ssub.s32 %s30, %s37
      %s231 = sor.u32 %s229, %s230
      %p232 = scmp.eq.s32.totalorder %s231, 0
      %s234 = sadd.s32 %s233, 1
      %s235 = scalar_select %p232, %s233, %s234
      %p238 = pneg %p232
      %p239 = scmp.eq.s32.totalorder %s22, 1
      %p240 = por %p238, %p239
      %p241 = scmp.ne.s32.totalorder %s233, %s236
      %p242 = scmp.eq.s32.totalorder %s22, 0
      %p243 = por %p241, %p242
      %p244 = scmp.ne.s32.totalorder %s233, %s236
      %p245 = scmp.eq.s32.totalorder %s27, 1
      %p246 = por %p244, %p245
      %p247 = scmp.ne.s32.totalorder %s236, %s237
      %p248 = scmp.eq.s32.totalorder %s27, 0
      %p249 = por %p247, %p248
      %p250 = scmp.ne.s32.totalorder %s236, %s237
      %p251 = scmp.eq.s32.totalorder %s28, 1
      %p252 = por %p250, %p251
      %p254 = scmp.ne.s32.totalorder %s237, %s253
      %p255 = scmp.eq.s32.totalorder %s28, 0
      %p256 = por %p254, %p255
      %s257 = ssub.s32 %s29, %s41
      %s258 = ssub.s32 %s30, %s37
      %s259 = sor.u32 %s257, %s258
      %p260 = scmp.eq.s32.totalorder %s259, 0
      %s262 = sadd.s32 %s261, 1
      %s263 = scalar_select %p260, %s261, %s262
      %p266 = pneg %p260
      %p267 = scmp.eq.s32.totalorder %s22, 1
      %p268 = por %p266, %p267
      %p269 = scmp.ne.s32.totalorder %s261, %s264
      %p270 = scmp.eq.s32.totalorder %s22, 0
      %p271 = por %p269, %p270
      %p272 = scmp.ne.s32.totalorder %s261, %s264
      %p273 = scmp.eq.s32.totalorder %s27, 1
      %p274 = por %p272, %p273
      %p275 = scmp.ne.s32.totalorder %s264, %s265
      %p276 = scmp.eq.s32.totalorder %s27, 0
      %p277 = por %p275, %p276
      %p278 = scmp.ne.s32.totalorder %s264, %s265
      %p279 = scmp.eq.s32.totalorder %s28, 1
      %p280 = por %p278, %p279
      %p282 = scmp.ne.s32.totalorder %s265, %s281
      %p283 = scmp.eq.s32.totalorder %s28, 0
      %p284 = por %p282, %p283
      %p285 = scmp.le.s32.totalorder 1, %s22
      %p286 = scmp.lt.s32.totalorder %s22, 3
      %p287 = pnand %p285, %p286
      %p288 = pneg %p287
      // Predicated region
      $region9: #{tpu_custom_call.1} parent=5 // pred_check
        _
      $region10: #{tpu_custom_call.1} parent=5 // pred_check_branch
        %290 = sbr.rel (%p287) target = $region12
      $region11: #{tpu_custom_call.1} parent=5 // pred_region
        %s291 = ssub.s32 %s22, 1
        // Predicated region
        $region13: #{tpu_custom_call.1} parent=11 // pred_check
          %p292 = pneg %p137
        $region14: #{tpu_custom_call.1} parent=11 // pred_check_branch
          %294 = sbr.rel (%p292) target = $region16
        $region15: #{tpu_custom_call.1} parent=11 // pred_region
          _
        $region16: #{tpu_custom_call.1} parent=11 // pred_fallthru
          _
        // Predicated region
        $region17: #{tpu_custom_call.1} parent=11 // pred_check
          %p295 = pneg %p158
        $region18: #{tpu_custom_call.1} parent=11 // pred_check_branch
          %297 = sbr.rel (%p295) target = $region20
        $region19: #{tpu_custom_call.1} parent=11 // pred_region
          _
        $region20: #{tpu_custom_call.1} parent=11 // pred_fallthru
          _
        // Predicated region
        $region21: #{tpu_custom_call.1} parent=11 // pred_check
          %p298 = pneg %p179
        $region22: #{tpu_custom_call.1} parent=11 // pred_check_branch
          %300 = sbr.rel (%p298) target = $region24
        $region23: #{tpu_custom_call.1} parent=11 // pred_region
          _
        $region24: #{tpu_custom_call.1} parent=11 // pred_fallthru
          _
        // Predicated region
        $region25: #{tpu_custom_call.1} parent=11 // pred_check
          %p301 = pneg %p200
        $region26: #{tpu_custom_call.1} parent=11 // pred_check_branch
          %303 = sbr.rel (%p301) target = $region28
        $region27: #{tpu_custom_call.1} parent=11 // pred_region
          _
        $region28: #{tpu_custom_call.1} parent=11 // pred_fallthru
          _
        // Predicated region
        $region29: #{tpu_custom_call.1} parent=11 // pred_check
          %p304 = pneg %p221
        $region30: #{tpu_custom_call.1} parent=11 // pred_check_branch
          %306 = sbr.rel (%p304) target = $region32
        $region31: #{tpu_custom_call.1} parent=11 // pred_region
          _
        $region32: #{tpu_custom_call.1} parent=11 // pred_fallthru
          _
      $region12: #{tpu_custom_call.1} parent=5 // pred_fallthru
        _
      %p307 = scmp.lt.s32.totalorder %s22, 2
      // Predicated region
      $region33: #{tpu_custom_call.1} parent=5 // pred_check
        %p308 = pneg %p307
      $region34: #{tpu_custom_call.1} parent=5 // pred_check_branch
        %310 = sbr.rel (%p308) target = $region36
      $region35: #{tpu_custom_call.1} parent=5 // pred_region
        // Predicated region
        $region37: #{tpu_custom_call.1} parent=35 // pred_check
          %p311 = pneg %p56
        $region38: #{tpu_custom_call.1} parent=35 // pred_check_branch
          %313 = sbr.rel (%p311) target = $region40
        $region39: #{tpu_custom_call.1} parent=35 // pred_region
          %p314 = scmp.lt.s32.totalorder %s29, 1
          %s315 = scalar_select %p314, %s29, 1
          %p316 = scmp.lt.s32.totalorder %s30, 0
          %s317 = scalar_select %p316, %s30, 0
          %s318 = sadd.s32 %s317, %s315
          %s319 = smul.addr %s318, 4
          %s320 = scalar_lea.vmem %s0, %s319
        $region40: #{tpu_custom_call.1} parent=35 // pred_fallthru
          _
        // Predicated region
        $region41: #{tpu_custom_call.1} parent=35 // pred_check
          %p321 = pneg %p84
        $region42: #{tpu_custom_call.1} parent=35 // pred_check_branch
          %323 = sbr.rel (%p321) target = $region44
        $region43: #{tpu_custom_call.1} parent=35 // pred_region
          %p324 = scmp.lt.s32.totalorder %s29, 1
          %s325 = scalar_select %p324, %s29, 1
          %p326 = scmp.lt.s32.totalorder %s30, 0
          %s327 = scalar_select %p326, %s30, 0
          %s328 = sadd.s32 %s327, %s325
          %s329 = smul.addr %s328, 8
          %s330 = scalar_lea.vmem %s1, %s329
        $region44: #{tpu_custom_call.1} parent=35 // pred_fallthru
          _
        // Predicated region
        $region45: #{tpu_custom_call.1} parent=35 // pred_check
          %p331 = pneg %p110
        $region46: #{tpu_custom_call.1} parent=35 // pred_check_branch
          %333 = sbr.rel (%p331) target = $region48
        $region47: #{tpu_custom_call.1} parent=35 // pred_region
          %p334 = scmp.lt.s32.totalorder %s29, 1
          %s335 = scalar_select %p334, %s29, 1
          %s336 = smul.addr %s335, 4
          %s337 = scalar_lea.vmem %s2, %s336
        $region48: #{tpu_custom_call.1} parent=35 // pred_fallthru
          _
      $region36: #{tpu_custom_call.1} parent=5 // pred_fallthru
        _
      %p338 = scmp.le.s32.totalorder 1, %s22
      %p339 = scmp.lt.s32.totalorder %s22, 3
      %p340 = pnand %p338, %p339
      %p341 = pneg %p340
      // Predicated region
      $region49: #{tpu_custom_call.1} parent=5 // pred_check
        _
      $region50: #{tpu_custom_call.1} parent=5 // pred_check_branch
        %343 = sbr.rel (%p340) target = $region52
      $region51: #{tpu_custom_call.1} parent=5 // pred_region
        %s344 = ssub.s32 %s22, 1
        %p345 = scmp.lt.s32.totalorder %s31, 1
        %s346 = scalar_select %p345, %s31, 1
        %p347 = scmp.lt.s32.totalorder %s32, 0
        %s348 = scalar_select %p347, %s32, 0
        %s349 = sadd.s32 %s348, %s346
        %s350 = smul.addr %s349, 4
        %s351 = scalar_lea.vmem %s0, %s350
        %p352 = pneg %p62
        %p353 = pneg %p59
        %p354 = scmp.lt.s32.totalorder %s31, 1
        %s355 = scalar_select %p354, %s31, 1
        %p356 = scmp.lt.s32.totalorder %s32, 0
        %s357 = scalar_select %p356, %s32, 0
        %s358 = sadd.s32 %s357, %s355
        %s359 = smul.addr %s358, 8
        %s360 = scalar_lea.vmem %s1, %s359
        %p361 = pneg %p90
        %p362 = pneg %p87
        %p363 = scmp.lt.s32.totalorder %s31, 1
        %s364 = scalar_select %p363, %s31, 1
        %s365 = smul.addr %s364, 4
        %s366 = scalar_lea.vmem %s2, %s365
        %p367 = pneg %p116
        %p368 = pneg %p113
        %p369 = pneg %p137
        %p370 = pneg %p134
        %p371 = pneg %p158
        %p372 = pneg %p155
        %p373 = pneg %p179
        %p374 = pneg %p176
        %p375 = pneg %p200
        %p376 = pneg %p197
        %p377 = pneg %p221
        %p378 = pneg %p218
        %p379 = pneg %p249
        %p380 = pneg %p246
        %s381 = sand.u32 %s236, 1
        %s382 = scalar_lea.sflag [#allocation3], %s381
        %s383 = sand.u32 %s236, 1
        %s384 = smul.addr %s383, 4
        %s385 = scalar_lea.vmem [#allocation2], %s384
        %p386 = pneg %p277
        %p387 = pneg %p274
        %s388 = sand.u32 %s264, 1
        %s389 = scalar_lea.sflag [#allocation5], %s388
        %s390 = sand.u32 %s264, 1
        %s391 = smul.addr %s390, 4
        %s392 = scalar_lea.vmem [#allocation4], %s391
        %p393 = scmp.lt.s32.totalorder %s31, 1
        %s394 = scalar_select %p393, %s31, 1
        %p395 = scmp.lt.s32.totalorder %s32, 0
        %s396 = scalar_select %p395, %s32, 0
        %s397 = sadd.s32 %s396, %s394
        %s398 = smul.addr %s397, 4
        %s399 = scalar_lea.vmem %s0, %s398
        %p400 = scmp.lt.s32.totalorder %s31, 1
        %s401 = scalar_select %p400, %s31, 1
        %p402 = scmp.lt.s32.totalorder %s32, 0
        %s403 = scalar_select %p402, %s32, 0
        %s404 = sadd.s32 %s403, %s401
        %s405 = smul.addr %s404, 8
        %s406 = scalar_lea.vmem %s1, %s405
        %p407 = scmp.lt.s32.totalorder %s31, 1
        %s408 = scalar_select %p407, %s31, 1
        %s409 = smul.addr %s408, 4
        %s410 = scalar_lea.vmem %s2, %s409
        %v411 = vld [vmem:[%s399] sm:$0xf]
        %v412 = vld [vmem:[%s410] sm:$0xf]
        %v413 = vlaneseq
        %v414 = vand.u32 %v413, 127
        %s415 = smul.u32 %s32, 16
        %v416 = vstv %s415
        %v417 = vadd.s32 %v414, %v416
        %vm418 = vcmp.ge.s32.totalorder %v417, 2
        %vm419 = vcmp.lt.s32.totalorder %v417, 18
        %vm420 = vmand %vm418, %vm419
        %422 = vset.pattern.permute.xlu0 0
        %423 = vperm.xlu0 %422, %v412
        %v424 = vpop.permute.xlu0 %423
        %v426 = vadd.f32 %v411, %v424
        %v427 = vsel %vm420, 1, 0
        %vm428 = vcmp.eq.s32.totalorder %v427, 1
        %v429 = vsel %vm428, %v426, 0.0
        %v430 = vld [vmem:[%s3] sm:$0xff]
        %s431 = scalar_lea.vmem %s3, 8
        %v432 = vld [vmem:[%s431] sm:$0xff]
        %434 = vrot.lane.b32.xlu0 %v429, 126
        %v435 = vpop.permute.xlu0 %434
        %vm436 = vcmask 31744
        %v438 = vsel %vm436, %v432, 0
        %vm440 = vcmask 1043456
        %v441 = vsel %vm440, %v435, 0
        %443 = vmatprep.subr.mxu0 0.0
        %444 = vmatpush1.msra.mxu0 %v441
        %445 = vmatprep.subr.mxu0 0.0
        %446 = vmatpush1.msra.mxu0 0.0
        %447 = vmatprep.subr.mxu0 0.0
        %448 = vmatpush1.msra.mxu0 0.0
        %449 = vmatprep.subr.mxu0 0.0
        %450 = vmatpush1.msra.mxu0 0.0
        %451 = vmatprep.subr.mxu0 0.0
        %452 = vmatpush1.msra.mxu0 0.0
        %453 = vmatprep.subr.mxu0 0.0
        %454 = vmatpush1.msra.mxu0 0.0
        %455 = vmatprep.subr.mxu0 0.0
        %456 = vmatpush1.msra.mxu0 0.0
        %457 = vmatprep.subr.mxu0 0.0
        %458 = vmatpush1.msra.mxu0 0.0
        %459 = vmatprep.subr.mxu0 0.0
        %460 = vmatpush1.msra.mxu0 0.0
        %461 = vmatprep.subr.mxu0 0.0
        %462 = vmatpush1.msra.mxu0 0.0
        %463 = vmatprep.subr.mxu0 0.0
        %464 = vmatpush1.msra.mxu0 0.0
        %465 = vmatprep.subr.mxu0 0.0
        %466 = vmatpush1.msra.mxu0 0.0
        %467 = vmatprep.subr.mxu0 0.0
        %468 = vmatpush1.msra.mxu0 0.0
        %469 = vmatprep.subr.mxu0 0.0
        %470 = vmatpush1.msra.mxu0 0.0
        %471 = vmatprep.subr.mxu0 0.0
        %472 = vmatpush1.msra.mxu0 0.0
        %473 = vmatprep.subr.mxu0 0.0
        %474 = vmatpush1.msra.mxu0 0.0
        %475 = vmatprep.subr.mxu0 0.0
        %476 = vmatpush1.msra.mxu0 0.0
        %477 = vmatprep.subr.mxu0 0.0
        %478 = vmatpush1.msra.mxu0 0.0
        %479 = vmatprep.subr.mxu0 0.0
        %480 = vmatpush1.msra.mxu0 0.0
        %481 = vmatprep.subr.mxu0 0.0
        %482 = vmatpush1.msra.mxu0 0.0
        %483 = vmatprep.subr.mxu0 0.0
        %484 = vmatpush1.msra.mxu0 0.0
        %485 = vmatprep.subr.mxu0 0.0
        %486 = vmatpush1.msra.mxu0 0.0
        %487 = vmatprep.subr.mxu0 0.0
        %488 = vmatpush1.msra.mxu0 0.0
        %489 = vmatprep.subr.mxu0 0.0
        %490 = vmatpush1.msra.mxu0 0.0
        %491 = vmatprep.subr.mxu0 0.0
        %492 = vmatpush1.msra.mxu0 0.0
        %493 = vmatprep.subr.mxu0 0.0
        %494 = vmatpush1.msra.mxu0 0.0
        %495 = vmatprep.subr.mxu0 0.0
        %496 = vmatpush1.msra.mxu0 0.0
        %497 = vmatprep.subr.mxu0 0.0
        %498 = vmatpush1.msra.mxu0 0.0
        %499 = vmatprep.subr.mxu0 0.0
        %500 = vmatpush1.msra.mxu0 0.0
        %501 = vmatprep.subr.mxu0 0.0
        %502 = vmatpush1.msra.mxu0 0.0
        %503 = vmatprep.subr.mxu0 0.0
        %504 = vmatpush1.msra.mxu0 0.0
        %505 = vmatprep.subr.mxu0 0.0
        %506 = vmatpush1.msra.mxu0 0.0
        %507 = vmatprep.mubr.f32.mxu0 0.0
        %508 = vmatmul.mubr.f32.gmra.mrb[0].mxu0 %v438
        %v509 = vpop.f32.mrb[0].mxu0
        %v510 = vadd.f32 0.0, %v509
        %v511 = vpop.f32.mrb[0].mxu0
        %512 = vdwg.mxu0
        %v514 = vsel %vm436, %v430, 0
        %v516 = vsel %vm440, %v429, 0
        %518 = vmatprep.subr.mxu0 0.0
        %519 = vmatpush1.msra.mxu0 %v516
        %520 = vmatprep.subr.mxu0 0.0
        %521 = vmatpush1.msra.mxu0 0.0
        %522 = vmatprep.subr.mxu0 0.0
        %523 = vmatpush1.msra.mxu0 0.0
        %524 = vmatprep.subr.mxu0 0.0
        %525 = vmatpush1.msra.mxu0 0.0
        %526 = vmatprep.subr.mxu0 0.0
        %527 = vmatpush1.msra.mxu0 0.0
        %528 = vmatprep.subr.mxu0 0.0
        %529 = vmatpush1.msra.mxu0 0.0
        %530 = vmatprep.subr.mxu0 0.0
        %531 = vmatpush1.msra.mxu0 0.0
        %532 = vmatprep.subr.mxu0 0.0
        %533 = vmatpush1.msra.mxu0 0.0
        %534 = vmatprep.subr.mxu0 0.0
        %535 = vmatpush1.msra.mxu0 0.0
        %536 = vmatprep.subr.mxu0 0.0
        %537 = vmatpush1.msra.mxu0 0.0
        %538 = vmatprep.subr.mxu0 0.0
        %539 = vmatpush1.msra.mxu0 0.0
        %540 = vmatprep.subr.mxu0 0.0
        %541 = vmatpush1.msra.mxu0 0.0
        %542 = vmatprep.subr.mxu0 0.0
        %543 = vmatpush1.msra.mxu0 0.0
        %544 = vmatprep.subr.mxu0 0.0
        %545 = vmatpush1.msra.mxu0 0.0
        %546 = vmatprep.subr.mxu0 0.0
        %547 = vmatpush1.msra.mxu0 0.0
        %548 = vmatprep.subr.mxu0 0.0
        %549 = vmatpush1.msra.mxu0 0.0
        %550 = vmatprep.subr.mxu0 0.0
        %551 = vmatpush1.msra.mxu0 0.0
        %552 = vmatprep.subr.mxu0 0.0
        %553 = vmatpush1.msra.mxu0 0.0
        %554 = vmatprep.subr.mxu0 0.0
        %555 = vmatpush1.msra.mxu0 0.0
        %556 = vmatprep.subr.mxu0 0.0
        %557 = vmatpush1.msra.mxu0 0.0
        %558 = vmatprep.subr.mxu0 0.0
        %559 = vmatpush1.msra.mxu0 0.0
        %560 = vmatprep.subr.mxu0 0.0
        %561 = vmatpush1.msra.mxu0 0.0
        %562 = vmatprep.subr.mxu0 0.0
        %563 = vmatpush1.msra.mxu0 0.0
        %564 = vmatprep.subr.mxu0 0.0
        %565 = vmatpush1.msra.mxu0 0.0
        %566 = vmatprep.subr.mxu0 0.0
        %567 = vmatpush1.msra.mxu0 0.0
        %568 = vmatprep.subr.mxu0 0.0
        %569 = vmatpush1.msra.mxu0 0.0
        %570 = vmatprep.subr.mxu0 0.0
        %571 = vmatpush1.msra.mxu0 0.0
        %572 = vmatprep.subr.mxu0 0.0
        %573 = vmatpush1.msra.mxu0 0.0
        %574 = vmatprep.subr.mxu0 0.0
        %575 = vmatpush1.msra.mxu0 0.0
        %576 = vmatprep.subr.mxu0 0.0
        %577 = vmatpush1.msra.mxu0 0.0
        %578 = vmatprep.subr.mxu0 0.0
        %579 = vmatpush1.msra.mxu0 0.0
        %580 = vmatprep.subr.mxu0 0.0
        %581 = vmatpush1.msra.mxu0 0.0
        %582 = vmatprep.mubr.f32.mxu0 0.0
        %583 = vmatmul.mubr.f32.gmra.mrb[0].mxu0 %v514
        %v584 = vpop.f32.mrb[0].mxu0
        %v585 = vadd.f32 %v510, %v584
        %v586 = vpop.f32.mrb[0].mxu0
        %587 = vdwg.mxu0
        %s588 = scalar_lea.vmem %s3, 16
        %v589 = vld [vmem:[%s588] sm:$0xff]
        %590 = vrot.lane.b32.xlu0 %v429, 124
        %v591 = vpop.permute.xlu0 %590
        %v593 = vsel %vm436, %v589, 0
        %v595 = vsel %vm440, %v591, 0
        %597 = vmatprep.subr.mxu0 0.0
        %598 = vmatpush1.msra.mxu0 %v595
        %599 = vmatprep.subr.mxu0 0.0
        %600 = vmatpush1.msra.mxu0 0.0
        %601 = vmatprep.subr.mxu0 0.0
        %602 = vmatpush1.msra.mxu0 0.0
        %603 = vmatprep.subr.mxu0 0.0
        %604 = vmatpush1.msra.mxu0 0.0
        %605 = vmatprep.subr.mxu0 0.0
        %606 = vmatpush1.msra.mxu0 0.0
        %607 = vmatprep.subr.mxu0 0.0
        %608 = vmatpush1.msra.mxu0 0.0
        %609 = vmatprep.subr.mxu0 0.0
        %610 = vmatpush1.msra.mxu0 0.0
        %611 = vmatprep.subr.mxu0 0.0
        %612 = vmatpush1.msra.mxu0 0.0
        %613 = vmatprep.subr.mxu0 0.0
        %614 = vmatpush1.msra.mxu0 0.0
        %615 = vmatprep.subr.mxu0 0.0
        %616 = vmatpush1.msra.mxu0 0.0
        %617 = vmatprep.subr.mxu0 0.0
        %618 = vmatpush1.msra.mxu0 0.0
        %619 = vmatprep.subr.mxu0 0.0
        %620 = vmatpush1.msra.mxu0 0.0
        %621 = vmatprep.subr.mxu0 0.0
        %622 = vmatpush1.msra.mxu0 0.0
        %623 = vmatprep.subr.mxu0 0.0
        %624 = vmatpush1.msra.mxu0 0.0
        %625 = vmatprep.subr.mxu0 0.0
        %626 = vmatpush1.msra.mxu0 0.0
        %627 = vmatprep.subr.mxu0 0.0
        %628 = vmatpush1.msra.mxu0 0.0
        %629 = vmatprep.subr.mxu0 0.0
        %630 = vmatpush1.msra.mxu0 0.0
        %631 = vmatprep.subr.mxu0 0.0
        %632 = vmatpush1.msra.mxu0 0.0
        %633 = vmatprep.subr.mxu0 0.0
        %634 = vmatpush1.msra.mxu0 0.0
        %635 = vmatprep.subr.mxu0 0.0
        %636 = vmatpush1.msra.mxu0 0.0
        %637 = vmatprep.subr.mxu0 0.0
        %638 = vmatpush1.msra.mxu0 0.0
        %639 = vmatprep.subr.mxu0 0.0
        %640 = vmatpush1.msra.mxu0 0.0
        %641 = vmatprep.subr.mxu0 0.0
        %642 = vmatpush1.msra.mxu0 0.0
        %643 = vmatprep.subr.mxu0 0.0
        %644 = vmatpush1.msra.mxu0 0.0
        %645 = vmatprep.subr.mxu0 0.0
        %646 = vmatpush1.msra.mxu0 0.0
        %647 = vmatprep.subr.mxu0 0.0
        %648 = vmatpush1.msra.mxu0 0.0
        %649 = vmatprep.subr.mxu0 0.0
        %650 = vmatpush1.msra.mxu0 0.0
        %651 = vmatprep.subr.mxu0 0.0
        %652 = vmatpush1.msra.mxu0 0.0
        %653 = vmatprep.subr.mxu0 0.0
        %654 = vmatpush1.msra.mxu0 0.0
        %655 = vmatprep.subr.mxu0 0.0
        %656 = vmatpush1.msra.mxu0 0.0
        %657 = vmatprep.subr.mxu0 0.0
        %658 = vmatpush1.msra.mxu0 0.0
        %659 = vmatprep.subr.mxu0 0.0
        %660 = vmatpush1.msra.mxu0 0.0
        %661 = vmatprep.mubr.f32.mxu0 0.0
        %662 = vmatmul.mubr.f32.gmra.mrb[0].mxu0 %v593
        %v663 = vpop.f32.mrb[0].mxu0
        %v664 = vadd.f32 0.0, %v663
        %v665 = vpop.f32.mrb[0].mxu0
        %666 = vdwg.mxu0
        %v667 = vadd.f32 %v585, %v664
        %v668 = vld [vmem:[%s4] sm:$0xff]
        %v669 = vld [vmem:[%s406] sm:$0xff]
        %vm670 = vcmask 64512
        %v672 = vsel %vm670, %v668, 0
        %674 = vmatprep.subr.mxu0 0.0
        %675 = vmatpush1.msra.mxu0 %v669
        %676 = vmatprep.subr.mxu0 0.0
        %677 = vmatpush1.msra.mxu0 0.0
        %678 = vmatprep.subr.mxu0 0.0
        %679 = vmatpush1.msra.mxu0 0.0
        %680 = vmatprep.subr.mxu0 0.0
        %681 = vmatpush1.msra.mxu0 0.0
        %682 = vmatprep.subr.mxu0 0.0
        %683 = vmatpush1.msra.mxu0 0.0
        %684 = vmatprep.subr.mxu0 0.0
        %685 = vmatpush1.msra.mxu0 0.0
        %686 = vmatprep.subr.mxu0 0.0
        %687 = vmatpush1.msra.mxu0 0.0
        %688 = vmatprep.subr.mxu0 0.0
        %689 = vmatpush1.msra.mxu0 0.0
        %690 = vmatprep.subr.mxu0 0.0
        %691 = vmatpush1.msra.mxu0 0.0
        %692 = vmatprep.subr.mxu0 0.0
        %693 = vmatpush1.msra.mxu0 0.0
        %694 = vmatprep.subr.mxu0 0.0
        %695 = vmatpush1.msra.mxu0 0.0
        %696 = vmatprep.subr.mxu0 0.0
        %697 = vmatpush1.msra.mxu0 0.0
        %698 = vmatprep.subr.mxu0 0.0
        %699 = vmatpush1.msra.mxu0 0.0
        %700 = vmatprep.subr.mxu0 0.0
        %701 = vmatpush1.msra.mxu0 0.0
        %702 = vmatprep.subr.mxu0 0.0
        %703 = vmatpush1.msra.mxu0 0.0
        %704 = vmatprep.subr.mxu0 0.0
        %705 = vmatpush1.msra.mxu0 0.0
        %706 = vmatprep.subr.mxu0 0.0
        %707 = vmatpush1.msra.mxu0 0.0
        %708 = vmatprep.subr.mxu0 0.0
        %709 = vmatpush1.msra.mxu0 0.0
        %710 = vmatprep.subr.mxu0 0.0
        %711 = vmatpush1.msra.mxu0 0.0
        %712 = vmatprep.subr.mxu0 0.0
        %713 = vmatpush1.msra.mxu0 0.0
        %714 = vmatprep.subr.mxu0 0.0
        %715 = vmatpush1.msra.mxu0 0.0
        %716 = vmatprep.subr.mxu0 0.0
        %717 = vmatpush1.msra.mxu0 0.0
        %718 = vmatprep.subr.mxu0 0.0
        %719 = vmatpush1.msra.mxu0 0.0
        %720 = vmatprep.subr.mxu0 0.0
        %721 = vmatpush1.msra.mxu0 0.0
        %722 = vmatprep.subr.mxu0 0.0
        %723 = vmatpush1.msra.mxu0 0.0
        %724 = vmatprep.subr.mxu0 0.0
        %725 = vmatpush1.msra.mxu0 0.0
        %726 = vmatprep.subr.mxu0 0.0
        %727 = vmatpush1.msra.mxu0 0.0
        %728 = vmatprep.subr.mxu0 0.0
        %729 = vmatpush1.msra.mxu0 0.0
        %730 = vmatprep.subr.mxu0 0.0
        %731 = vmatpush1.msra.mxu0 0.0
        %732 = vmatprep.subr.mxu0 0.0
        %733 = vmatpush1.msra.mxu0 0.0
        %734 = vmatprep.subr.mxu0 0.0
        %735 = vmatpush1.msra.mxu0 0.0
        %736 = vmatprep.subr.mxu0 0.0
        %737 = vmatpush1.msra.mxu0 0.0
        %738 = vmatprep.mubr.f32.mxu0 0.0
        %739 = vmatmul.mubr.f32.gmra.mrb[0].mxu0 %v672
        %v740 = vpop.f32.mrb[0].mxu0
        %v741 = vadd.f32 0.0, %v740
        %v742 = vpop.f32.mrb[0].mxu0
        %743 = vdwg.mxu0
        %v744 = vadd.f32 %v667, %v741
        %v745 = vld [vmem:[%s5] sm:$0xff]
        %747 = vset.pattern.permute.xlu0 0
        %748 = vperm.xlu0 %747, %v745
        %v749 = vpop.permute.xlu0 %748
        %v751 = vadd.f32 %v744, %v749
        %v752 = vxor.u32 %v751, 2147483648
        %v753 = vmul.f32 %v752, 1.442695
        %v754 = vpow.pop %v753
        %v755 = vadd.f32 %v754, 1.0
        %v756 = vrcp.pop %v755
        %v757 = vmul.f32 1.0, %v756
        %v758 = vtanh.pop %v751
        %v760 = vrot.slane %v758, 4
        %v762 = vmul.f32 %v757, %v760
        %v763 = vld [vmem:[%s6] sm:$0xff]
        %v764 = vld [vmem:[%s7] sm:$0xff]
        %766 = vset.pattern.permute.xlu0 0
        %767 = vperm.xlu0 %766, %v764
        %v768 = vpop.permute.xlu0 %767
        %v771 = vsel %vm436, %v763, 0
        %v774 = vsel %vm440, %v762, 0
        %776 = vmatprep.subr.mxu0 0.0
        %777 = vmatpush1.msra.mxu0 %v774
        %778 = vmatprep.subr.mxu0 0.0
        %779 = vmatpush1.msra.mxu0 0.0
        %780 = vmatprep.subr.mxu0 0.0
        %781 = vmatpush1.msra.mxu0 0.0
        %782 = vmatprep.subr.mxu0 0.0
        %783 = vmatpush1.msra.mxu0 0.0
        %784 = vmatprep.subr.mxu0 0.0
        %785 = vmatpush1.msra.mxu0 0.0
        %786 = vmatprep.subr.mxu0 0.0
        %787 = vmatpush1.msra.mxu0 0.0
        %788 = vmatprep.subr.mxu0 0.0
        %789 = vmatpush1.msra.mxu0 0.0
        %790 = vmatprep.subr.mxu0 0.0
        %791 = vmatpush1.msra.mxu0 0.0
        %792 = vmatprep.subr.mxu0 0.0
        %793 = vmatpush1.msra.mxu0 0.0
        %794 = vmatprep.subr.mxu0 0.0
        %795 = vmatpush1.msra.mxu0 0.0
        %796 = vmatprep.subr.mxu0 0.0
        %797 = vmatpush1.msra.mxu0 0.0
        %798 = vmatprep.subr.mxu0 0.0
        %799 = vmatpush1.msra.mxu0 0.0
        %800 = vmatprep.subr.mxu0 0.0
        %801 = vmatpush1.msra.mxu0 0.0
        %802 = vmatprep.subr.mxu0 0.0
        %803 = vmatpush1.msra.mxu0 0.0
        %804 = vmatprep.subr.mxu0 0.0
        %805 = vmatpush1.msra.mxu0 0.0
        %806 = vmatprep.subr.mxu0 0.0
        %807 = vmatpush1.msra.mxu0 0.0
        %808 = vmatprep.subr.mxu0 0.0
        %809 = vmatpush1.msra.mxu0 0.0
        %810 = vmatprep.subr.mxu0 0.0
        %811 = vmatpush1.msra.mxu0 0.0
        %812 = vmatprep.subr.mxu0 0.0
        %813 = vmatpush1.msra.mxu0 0.0
        %814 = vmatprep.subr.mxu0 0.0
        %815 = vmatpush1.msra.mxu0 0.0
        %816 = vmatprep.subr.mxu0 0.0
        %817 = vmatpush1.msra.mxu0 0.0
        %818 = vmatprep.subr.mxu0 0.0
        %819 = vmatpush1.msra.mxu0 0.0
        %820 = vmatprep.subr.mxu0 0.0
        %821 = vmatpush1.msra.mxu0 0.0
        %822 = vmatprep.subr.mxu0 0.0
        %823 = vmatpush1.msra.mxu0 0.0
        %824 = vmatprep.subr.mxu0 0.0
        %825 = vmatpush1.msra.mxu0 0.0
        %826 = vmatprep.subr.mxu0 0.0
        %827 = vmatpush1.msra.mxu0 0.0
        %828 = vmatprep.subr.mxu0 0.0
        %829 = vmatpush1.msra.mxu0 0.0
        %830 = vmatprep.subr.mxu0 0.0
        %831 = vmatpush1.msra.mxu0 0.0
        %832 = vmatprep.subr.mxu0 0.0
        %833 = vmatpush1.msra.mxu0 0.0
        %834 = vmatprep.subr.mxu0 0.0
        %835 = vmatpush1.msra.mxu0 0.0
        %836 = vmatprep.subr.mxu0 0.0
        %837 = vmatpush1.msra.mxu0 0.0
        %838 = vmatprep.subr.mxu0 0.0
        %839 = vmatpush1.msra.mxu0 0.0
        %840 = vmatprep.mubr.f32.mxu0 0.0
        %841 = vmatmul.mubr.f32.gmra.mrb[0].mxu0 %v771
        %v842 = vpop.f32.mrb[0].mxu0
        %v843 = vadd.f32 %v768, %v842
        %v844 = vpop.f32.mrb[0].mxu0
        %845 = vdwg.mxu0
        %847 = vrot.lane.b32.xlu0 %v843, 2
        %v848 = vpop.permute.xlu0 %847
        %v850 = vadd.f32 %v411, %v848
        %v851 = vmul.f32 %v850, 0.70710677
        %853 = vrot.lane.b32.xlu0 %v851, 126
        %v854 = vpop.permute.xlu0 %853
        %vm856 = vcmask 125952
        %857 = vst.msk [vmem:[%s385] sm:$0xf] %vm856, %v854
        %vm858 = vcmask 130052
        %859 = vst.msk [vmem:[%s392 - $0x4] sm:$0xf0] %vm858, %v843
        %s860 = sand.u32 %s236, 1
        %s861 = scalar_lea.sflag [#allocation3], %s860
        %s862 = sand.u32 %s236, 1
        %s863 = smul.addr %s862, 4
        %s864 = scalar_lea.vmem [#allocation2], %s863
        %s865 = sand.u32 %s264, 1
        %s866 = scalar_lea.sflag [#allocation5], %s865
        %s867 = sand.u32 %s264, 1
        %s868 = smul.addr %s867, 4
        %s869 = scalar_lea.vmem [#allocation4], %s868
        // Predicated region
        $region53: #{tpu_custom_call.1} parent=51 // pred_check
          %p870 = pneg %p246
        $region54: #{tpu_custom_call.1} parent=51 // pred_check_branch
          %872 = sbr.rel (%p870) target = $region56
        $region55: #{tpu_custom_call.1} parent=51 // pred_region
          %s874 = ssub.s32 64, 64
          %875 = vsyncadd %s861, %s874
          %s876 = sadd.s32 %s32, %s31
          %s877 = smul.addr %s876, 64
          %s878 = scalar_lea.hbm %s8, %s877
          %s880 = sshll.u32 %s864, 4
          %s881 = int_to_ptr.vmem [resolvable:$true] %s880
          %883 = dma.vmem_to_hbm [thread:$0]  %s881, 64, %s878, %s861
        $region56: #{tpu_custom_call.1} parent=51 // pred_fallthru
          _
        // Predicated region
        $region57: #{tpu_custom_call.1} parent=51 // pred_check
          %p884 = pneg %p274
        $region58: #{tpu_custom_call.1} parent=51 // pred_check_branch
          %886 = sbr.rel (%p884) target = $region60
        $region59: #{tpu_custom_call.1} parent=51 // pred_region
          %s888 = ssub.s32 64, 64
          %889 = vsyncadd %s866, %s888
          %s890 = sadd.s32 %s32, %s31
          %s891 = smul.addr %s890, 64
          %s892 = scalar_lea.hbm %s9, %s891
          %s894 = sshll.u32 %s869, 4
          %s895 = int_to_ptr.vmem [resolvable:$true] %s894
          %897 = dma.vmem_to_hbm [thread:$0]  %s895, 64, %s892, %s866
        $region60: #{tpu_custom_call.1} parent=51 // pred_fallthru
          _
      $region52: #{tpu_custom_call.1} parent=5 // pred_fallthru
        _
      %p898 = scmp.le.s32.totalorder 2, %s22
      // Predicated region
      $region61: #{tpu_custom_call.1} parent=5 // pred_check
        %p899 = pneg %p898
      $region62: #{tpu_custom_call.1} parent=5 // pred_check_branch
        %901 = sbr.rel (%p899) target = $region64
      $region63: #{tpu_custom_call.1} parent=5 // pred_region
        %s902 = ssub.s32 %s22, 2
        // Predicated region
        $region65: #{tpu_custom_call.1} parent=63 // pred_check
          %p903 = pneg %p252
        $region66: #{tpu_custom_call.1} parent=63 // pred_check_branch
          %905 = sbr.rel (%p903) target = $region68
        $region67: #{tpu_custom_call.1} parent=63 // pred_region
          %s906 = sand.u32 %s237, 1
          %s907 = scalar_lea.sflag [#allocation3], %s906
          %s908 = sand.u32 %s237, 1
          %s909 = smul.addr %s908, 4
          %s910 = scalar_lea.vmem [#allocation2], %s909
          %911 = dma.done %s907, 64
        $region68: #{tpu_custom_call.1} parent=63 // pred_fallthru
          _
        // Predicated region
        $region69: #{tpu_custom_call.1} parent=63 // pred_check
          %p912 = pneg %p280
        $region70: #{tpu_custom_call.1} parent=63 // pred_check_branch
          %914 = sbr.rel (%p912) target = $region72
        $region71: #{tpu_custom_call.1} parent=63 // pred_region
          %s915 = sand.u32 %s265, 1
          %s916 = scalar_lea.sflag [#allocation5], %s915
          %s917 = sand.u32 %s265, 1
          %s918 = smul.addr %s917, 4
          %s919 = scalar_lea.vmem [#allocation4], %s918
          %920 = dma.done %s916, 64
        $region72: #{tpu_custom_call.1} parent=63 // pred_fallthru
          _
      $region64: #{tpu_custom_call.1} parent=5 // pred_fallthru
        _
    $region6: #{tpu_custom_call.1} parent=1 // loop_footer
      %s26 = sadd.s32 1, %s22
    $region7: #{tpu_custom_call.1} parent=1 // loop_footer_branch
      %21 = sbr.rel target = $region3
    $region8: #{tpu_custom_call.1} parent=1 // loop_exit
      _
    %921 = vsyncpa [#allocation3], 1
    %s922 = scalar_lea.sflag [#allocation3], 1
    %923 = vsyncpa %s922, 1
    %924 = vsyncpa [#allocation5], 1
    %s925 = scalar_lea.sflag [#allocation5], 1
    %926 = vsyncpa %s925, 1

// kernel: tpu_custom_call.1
$region0: #{tpu_custom_call.1}
  #allocation0 [shape = 'u32[]', space=smem, size = 0x4, offset = 0x4, fixed_abs, tag = 'smem constant byte address 0x4 - core index']
  #allocation1 [shape = 'u32[144,128]{1,0:T(1,128)}', space=vmem, size = 0x12000, scoped, tag = 'internal scratch']
  %s0 = inlined_call_operand.vmem [shape: f32[2,1,4,20], index: 0, kind: input, shape index: {}]
  %s1 = inlined_call_operand.vmem [shape: f32[2,8,16], index: 1, kind: input, shape index: {}]
  %s2 = inlined_call_operand.vmem [shape: f32[2,4,1], index: 2, kind: input, shape index: {}]
  %s3 = inlined_call_operand.vmem [shape: f32[3,8,4], index: 3, kind: input, shape index: {}]
  %s4 = inlined_call_operand.vmem [shape: f32[8,8], index: 4, kind: input, shape index: {}]
  %s5 = inlined_call_operand.vmem [shape: f32[8,1], index: 5, kind: input, shape index: {}]
  %s6 = inlined_call_operand.vmem [shape: f32[8,4], index: 6, kind: input, shape index: {}]
  %s7 = inlined_call_operand.vmem [shape: f32[8,1], index: 7, kind: input, shape index: {}]
  %s8 = inlined_call_operand.hbm [shape: f32[2,4,16], index: 8, kind: output, shape index: {0}]
  %s9 = inlined_call_operand.hbm [shape: f32[2,4,16], index: 9, kind: output, shape index: {1}]
  %10 = xla_tuple %s8, %s9
  %s11 = sld [smem:[#allocation0]]
  $region73: #{tpu_custom_call.1} parent=0
    _
  %s13 = ssub.s32 1, %s11
  %s14 = scalar_select 0, %s13, %s11
  $region1: #{tpu_custom_call.1} parent=0
    #allocation2 [shape = 'u8[4096]{0}', space=vmem, size = 0x1000, scoped, tag = 'output window, operand 0']
    #allocation3 [shape = 's32[2]{0}', space=sflag, size = 0x8, scoped, tag = 'scoped memory for tpu_custom_call.1']
    #allocation4 [shape = 'u8[4096]{0}', space=vmem, size = 0x1000, scoped, tag = 'output window, operand 1']
    #allocation5 [shape = 's32[2]{0}', space=sflag, size = 0x8, scoped, tag = 'scoped memory for tpu_custom_call.1']
    %15 = vsyncpa [#allocation3], 0
    %s16 = scalar_lea.sflag [#allocation3], 1
    %17 = vsyncpa %s16, 0
    %18 = vsyncpa [#allocation5], 0
    %s19 = scalar_lea.sflag [#allocation5], 1
    %20 = vsyncpa %s19, 0
    loop: start=0, step=1, limit=4
    $region2: #{tpu_custom_call.1} parent=1 // loop_pre_header
      _
    $region3: #{tpu_custom_call.1} parent=1 // loop_header
      %s22 = sphi 0, %s26
      %p23 = scmp.ge.s32.totalorder %s22, 4
      %s29 = sphi 0, %s41
      %s30 = sphi 0, %s37
      %s31 = sphi 0, %s29
      %s32 = sphi 0, %s30
      %s33 = sphi 0, %s31
      %s34 = sphi 0, %s32
      %s46 = sphi 0, %s48
      %s49 = sphi 0, %s46
      %s50 = sphi 0, %s49
      %s66 = sphi 0, %s50
      %s74 = sphi 0, %s76
      %s77 = sphi 0, %s74
      %s78 = sphi 0, %s77
      %s94 = sphi 0, %s78
      %s100 = sphi 0, %s102
      %s103 = sphi 0, %s100
      %s104 = sphi 0, %s103
      %s120 = sphi 0, %s104
      %s124 = sphi 0, %s124
      %s126 = sphi 0, %s124
      %s127 = sphi 0, %s126
      %s141 = sphi 0, %s127
      %s145 = sphi 0, %s145
      %s147 = sphi 0, %s145
      %s148 = sphi 0, %s147
      %s162 = sphi 0, %s148
      %s166 = sphi 0, %s166
      %s168 = sphi 0, %s166
      %s169 = sphi 0, %s168
      %s183 = sphi 0, %s169
      %s187 = sphi 0, %s187
      %s189 = sphi 0, %s187
      %s190 = sphi 0, %s189
      %s204 = sphi 0, %s190
      %s208 = sphi 0, %s208
      %s210 = sphi 0, %s208
      %s211 = sphi 0, %s210
      %s225 = sphi 0, %s211
      %s233 = sphi 0, %s235
      %s236 = sphi 0, %s233
      %s237 = sphi 0, %s236
      %s253 = sphi 0, %s237
      %s261 = sphi 0, %s263
      %s264 = sphi 0, %s261
      %s265 = sphi 0, %s264
      %s281 = sphi 0, %s265
    $region4: #{tpu_custom_call.1} parent=1 // loop_header_branch
      %25 = sbr.rel (%p23) target = $region8
    $region5: #{tpu_custom_call.1} parent=1 // loop_body
      %s27 = ssub.s32 %s22, 1
      %s28 = ssub.s32 %s22, 2
      %s35 = sadd.s32 1, %s30
      %p36 = scmp.ge.s32.totalorder %s35, 1
      %s37 = scalar_select %p36, 0, %s35
      %s38 = sadd.s32 1, %s29
      %s39 = scalar_select %p36, %s38, %s29
      %p40 = scmp.ge.s32.totalorder %s39, 2
      %s41 = scalar_select %p40, 0, %s39
      %s42 = ssub.s32 %s29, %s41
      %s43 = ssub.s32 %s30, %s37
      %s44 = sor.u32 %s42, %s43
      %p45 = scmp.eq.s32.totalorder %s44, 0
      %s47 = sadd.s32 %s46, 1
      %s48 = scalar_select %p45, %s46, %s47
      %p51 = pneg %p45
      %p52 = scmp.eq.s32.totalorder %s22, 1
      %p53 = por %p51, %p52
      %p54 = scmp.ne.s32.totalorder %s46, %s49
      %p55 = scmp.eq.s32.totalorder %s22, 0
      %p56 = por %p54, %p55
      %p57 = scmp.ne.s32.totalorder %s46, %s49
      %p58 = scmp.eq.s32.totalorder %s27, 1
      %p59 = por %p57, %p58
      %p60 = scmp.ne.s32.totalorder %s49, %s50
      %p61 = scmp.eq.s32.totalorder %s27, 0
      %p62 = por %p60, %p61
      %p63 = scmp.ne.s32.totalorder %s49, %s50
      %p64 = scmp.eq.s32.totalorder %s28, 1
      %p65 = por %p63, %p64
      %p67 = scmp.ne.s32.totalorder %s50, %s66
      %p68 = scmp.eq.s32.totalorder %s28, 0
      %p69 = por %p67, %p68
      %s70 = ssub.s32 %s29, %s41
      %s71 = ssub.s32 %s30, %s37
      %s72 = sor.u32 %s70, %s71
      %p73 = scmp.eq.s32.totalorder %s72, 0
      %s75 = sadd.s32 %s74, 1
      %s76 = scalar_select %p73, %s74, %s75
      %p79 = pneg %p73
      %p80 = scmp.eq.s32.totalorder %s22, 1
      %p81 = por %p79, %p80
      %p82 = scmp.ne.s32.totalorder %s74, %s77
      %p83 = scmp.eq.s32.totalorder %s22, 0
      %p84 = por %p82, %p83
      %p85 = scmp.ne.s32.totalorder %s74, %s77
      %p86 = scmp.eq.s32.totalorder %s27, 1
      %p87 = por %p85, %p86
      %p88 = scmp.ne.s32.totalorder %s77, %s78
      %p89 = scmp.eq.s32.totalorder %s27, 0
      %p90 = por %p88, %p89
      %p91 = scmp.ne.s32.totalorder %s77, %s78
      %p92 = scmp.eq.s32.totalorder %s28, 1
      %p93 = por %p91, %p92
      %p95 = scmp.ne.s32.totalorder %s78, %s94
      %p96 = scmp.eq.s32.totalorder %s28, 0
      %p97 = por %p95, %p96
      %s98 = ssub.s32 %s29, %s41
      %p99 = scmp.eq.s32.totalorder %s98, 0
      %s101 = sadd.s32 %s100, 1
      %s102 = scalar_select %p99, %s100, %s101
      %p105 = pneg %p99
      %p106 = scmp.eq.s32.totalorder %s22, 1
      %p107 = por %p105, %p106
      %p108 = scmp.ne.s32.totalorder %s100, %s103
      %p109 = scmp.eq.s32.totalorder %s22, 0
      %p110 = por %p108, %p109
      %p111 = scmp.ne.s32.totalorder %s100, %s103
      %p112 = scmp.eq.s32.totalorder %s27, 1
      %p113 = por %p111, %p112
      %p114 = scmp.ne.s32.totalorder %s103, %s104
      %p115 = scmp.eq.s32.totalorder %s27, 0
      %p116 = por %p114, %p115
      %p117 = scmp.ne.s32.totalorder %s103, %s104
      %p118 = scmp.eq.s32.totalorder %s28, 1
      %p119 = por %p117, %p118
      %p121 = scmp.ne.s32.totalorder %s104, %s120
      %p122 = scmp.eq.s32.totalorder %s28, 0
      %p123 = por %p121, %p122
      %s125 = sadd.s32 %s124, 1
      %p128 = scmp.eq.s32.totalorder %s22, 1
      %p129 = scmp.ne.s32.totalorder %s124, %s126
      %p130 = scmp.eq.s32.totalorder %s22, 0
      %p131 = por %p129, %p130
      %p132 = scmp.ne.s32.totalorder %s124, %s126
      %p133 = scmp.eq.s32.totalorder %s27, 1
      %p134 = por %p132, %p133
      %p135 = scmp.ne.s32.totalorder %s126, %s127
      %p136 = scmp.eq.s32.totalorder %s27, 0
      %p137 = por %p135, %p136
      %p138 = scmp.ne.s32.totalorder %s126, %s127
      %p139 = scmp.eq.s32.totalorder %s28, 1
      %p140 = por %p138, %p139
      %p142 = scmp.ne.s32.totalorder %s127, %s141
      %p143 = scmp.eq.s32.totalorder %s28, 0
      %p144 = por %p142, %p143
      %s146 = sadd.s32 %s145, 1
      %p149 = scmp.eq.s32.totalorder %s22, 1
      %p150 = scmp.ne.s32.totalorder %s145, %s147
      %p151 = scmp.eq.s32.totalorder %s22, 0
      %p152 = por %p150, %p151
      %p153 = scmp.ne.s32.totalorder %s145, %s147
      %p154 = scmp.eq.s32.totalorder %s27, 1
      %p155 = por %p153, %p154
      %p156 = scmp.ne.s32.totalorder %s147, %s148
      %p157 = scmp.eq.s32.totalorder %s27, 0
      %p158 = por %p156, %p157
      %p159 = scmp.ne.s32.totalorder %s147, %s148
      %p160 = scmp.eq.s32.totalorder %s28, 1
      %p161 = por %p159, %p160
      %p163 = scmp.ne.s32.totalorder %s148, %s162
      %p164 = scmp.eq.s32.totalorder %s28, 0
      %p165 = por %p163, %p164
      %s167 = sadd.s32 %s166, 1
      %p170 = scmp.eq.s32.totalorder %s22, 1
      %p171 = scmp.ne.s32.totalorder %s166, %s168
      %p172 = scmp.eq.s32.totalorder %s22, 0
      %p173 = por %p171, %p172
      %p174 = scmp.ne.s32.totalorder %s166, %s168
      %p175 = scmp.eq.s32.totalorder %s27, 1
      %p176 = por %p174, %p175
      %p177 = scmp.ne.s32.totalorder %s168, %s169
      %p178 = scmp.eq.s32.totalorder %s27, 0
      %p179 = por %p177, %p178
      %p180 = scmp.ne.s32.totalorder %s168, %s169
      %p181 = scmp.eq.s32.totalorder %s28, 1
      %p182 = por %p180, %p181
      %p184 = scmp.ne.s32.totalorder %s169, %s183
      %p185 = scmp.eq.s32.totalorder %s28, 0
      %p186 = por %p184, %p185
      %s188 = sadd.s32 %s187, 1
      %p191 = scmp.eq.s32.totalorder %s22, 1
      %p192 = scmp.ne.s32.totalorder %s187, %s189
      %p193 = scmp.eq.s32.totalorder %s22, 0
      %p194 = por %p192, %p193
      %p195 = scmp.ne.s32.totalorder %s187, %s189
      %p196 = scmp.eq.s32.totalorder %s27, 1
      %p197 = por %p195, %p196
      %p198 = scmp.ne.s32.totalorder %s189, %s190
      %p199 = scmp.eq.s32.totalorder %s27, 0
      %p200 = por %p198, %p199
      %p201 = scmp.ne.s32.totalorder %s189, %s190
      %p202 = scmp.eq.s32.totalorder %s28, 1
      %p203 = por %p201, %p202
      %p205 = scmp.ne.s32.totalorder %s190, %s204
      %p206 = scmp.eq.s32.totalorder %s28, 0
      %p207 = por %p205, %p206
      %s209 = sadd.s32 %s208, 1
      %p212 = scmp.eq.s32.totalorder %s22, 1
      %p213 = scmp.ne.s32.totalorder %s208, %s210
      %p214 = scmp.eq.s32.totalorder %s22, 0
      %p215 = por %p213, %p214
      %p216 = scmp.ne.s32.totalorder %s208, %s210
      %p217 = scmp.eq.s32.totalorder %s27, 1
      %p218 = por %p216, %p217
      %p219 = scmp.ne.s32.totalorder %s210, %s211
      %p220 = scmp.eq.s32.totalorder %s27, 0
      %p221 = por %p219, %p220
      %p222 = scmp.ne.s32.totalorder %s210, %s211
      %p223 = scmp.eq.s32.totalorder %s28, 1
      %p224 = por %p222, %p223
      %p226 = scmp.ne.s32.totalorder %s211, %s225
      %p227 = scmp.eq.s32.totalorder %s28, 0
      %p228 = por %p226, %p227
      %s229 = ssub.s32 %s29, %s41
      %s230 = ssub.s32 %s30, %s37
      %s231 = sor.u32 %s229, %s230
      %p232 = scmp.eq.s32.totalorder %s231, 0
      %s234 = sadd.s32 %s233, 1
      %s235 = scalar_select %p232, %s233, %s234
      %p238 = pneg %p232
      %p239 = scmp.eq.s32.totalorder %s22, 1
      %p240 = por %p238, %p239
      %p241 = scmp.ne.s32.totalorder %s233, %s236
      %p242 = scmp.eq.s32.totalorder %s22, 0
      %p243 = por %p241, %p242
      %p244 = scmp.ne.s32.totalorder %s233, %s236
      %p245 = scmp.eq.s32.totalorder %s27, 1
      %p246 = por %p244, %p245
      %p247 = scmp.ne.s32.totalorder %s236, %s237
      %p248 = scmp.eq.s32.totalorder %s27, 0
      %p249 = por %p247, %p248
      %p250 = scmp.ne.s32.totalorder %s236, %s237
      %p251 = scmp.eq.s32.totalorder %s28, 1
      %p252 = por %p250, %p251
      %p254 = scmp.ne.s32.totalorder %s237, %s253
      %p255 = scmp.eq.s32.totalorder %s28, 0
      %p256 = por %p254, %p255
      %s257 = ssub.s32 %s29, %s41
      %s258 = ssub.s32 %s30, %s37
      %s259 = sor.u32 %s257, %s258
      %p260 = scmp.eq.s32.totalorder %s259, 0
      %s262 = sadd.s32 %s261, 1
      %s263 = scalar_select %p260, %s261, %s262
      %p266 = pneg %p260
      %p267 = scmp.eq.s32.totalorder %s22, 1
      %p268 = por %p266, %p267
      %p269 = scmp.ne.s32.totalorder %s261, %s264
      %p270 = scmp.eq.s32.totalorder %s22, 0
      %p271 = por %p269, %p270
      %p272 = scmp.ne.s32.totalorder %s261, %s264
      %p273 = scmp.eq.s32.totalorder %s27, 1
      %p274 = por %p272, %p273
      %p275 = scmp.ne.s32.totalorder %s264, %s265
      %p276 = scmp.eq.s32.totalorder %s27, 0
      %p277 = por %p275, %p276
      %p278 = scmp.ne.s32.totalorder %s264, %s265
      %p279 = scmp.eq.s32.totalorder %s28, 1
      %p280 = por %p278, %p279
      %p282 = scmp.ne.s32.totalorder %s265, %s281
      %p283 = scmp.eq.s32.totalorder %s28, 0
      %p284 = por %p282, %p283
      %p285 = scmp.le.s32.totalorder 1, %s22
      %p286 = scmp.lt.s32.totalorder %s22, 3
      %p287 = pnand %p285, %p286
      %p288 = pneg %p287
      // Predicated region
      $region9: #{tpu_custom_call.1} parent=5 // pred_check
        _
      $region10: #{tpu_custom_call.1} parent=5 // pred_check_branch
        %290 = sbr.rel (%p287) target = $region12
      $region11: #{tpu_custom_call.1} parent=5 // pred_region
        %s291 = ssub.s32 %s22, 1
        // Predicated region
        $region13: #{tpu_custom_call.1} parent=11 // pred_check
          %p292 = pneg %p137
        $region14: #{tpu_custom_call.1} parent=11 // pred_check_branch
          %294 = sbr.rel (%p292) target = $region16
        $region15: #{tpu_custom_call.1} parent=11 // pred_region
          _
        $region16: #{tpu_custom_call.1} parent=11 // pred_fallthru
          _
        // Predicated region
        $region17: #{tpu_custom_call.1} parent=11 // pred_check
          %p295 = pneg %p158
        $region18: #{tpu_custom_call.1} parent=11 // pred_check_branch
          %297 = sbr.rel (%p295) target = $region20
        $region19: #{tpu_custom_call.1} parent=11 // pred_region
          _
        $region20: #{tpu_custom_call.1} parent=11 // pred_fallthru
          _
        // Predicated region
        $region21: #{tpu_custom_call.1} parent=11 // pred_check
          %p298 = pneg %p179
        $region22: #{tpu_custom_call.1} parent=11 // pred_check_branch
          %300 = sbr.rel (%p298) target = $region24
        $region23: #{tpu_custom_call.1} parent=11 // pred_region
          _
        $region24: #{tpu_custom_call.1} parent=11 // pred_fallthru
          _
        // Predicated region
        $region25: #{tpu_custom_call.1} parent=11 // pred_check
          %p301 = pneg %p200
        $region26: #{tpu_custom_call.1} parent=11 // pred_check_branch
          %303 = sbr.rel (%p301) target = $region28
        $region27: #{tpu_custom_call.1} parent=11 // pred_region
          _
        $region28: #{tpu_custom_call.1} parent=11 // pred_fallthru
          _
        // Predicated region
        $region29: #{tpu_custom_call.1} parent=11 // pred_check
          %p304 = pneg %p221
        $region30: #{tpu_custom_call.1} parent=11 // pred_check_branch
          %306 = sbr.rel (%p304) target = $region32
        $region31: #{tpu_custom_call.1} parent=11 // pred_region
          _
        $region32: #{tpu_custom_call.1} parent=11 // pred_fallthru
          _
      $region12: #{tpu_custom_call.1} parent=5 // pred_fallthru
        _
      %p307 = scmp.lt.s32.totalorder %s22, 2
      // Predicated region
      $region33: #{tpu_custom_call.1} parent=5 // pred_check
        %p308 = pneg %p307
      $region34: #{tpu_custom_call.1} parent=5 // pred_check_branch
        %310 = sbr.rel (%p308) target = $region36
      $region35: #{tpu_custom_call.1} parent=5 // pred_region
        // Predicated region
        $region37: #{tpu_custom_call.1} parent=35 // pred_check
          %p311 = pneg %p56
        $region38: #{tpu_custom_call.1} parent=35 // pred_check_branch
          %313 = sbr.rel (%p311) target = $region40
        $region39: #{tpu_custom_call.1} parent=35 // pred_region
          %p314 = scmp.lt.s32.totalorder %s29, 1
          %s315 = scalar_select %p314, %s29, 1
          %p316 = scmp.lt.s32.totalorder %s30, 0
          %s317 = scalar_select %p316, %s30, 0
          %s318 = sadd.s32 %s317, %s315
          %s319 = smul.addr %s318, 4
          %s320 = scalar_lea.vmem %s0, %s319
        $region40: #{tpu_custom_call.1} parent=35 // pred_fallthru
          _
        // Predicated region
        $region41: #{tpu_custom_call.1} parent=35 // pred_check
          %p321 = pneg %p84
        $region42: #{tpu_custom_call.1} parent=35 // pred_check_branch
          %323 = sbr.rel (%p321) target = $region44
        $region43: #{tpu_custom_call.1} parent=35 // pred_region
          %p324 = scmp.lt.s32.totalorder %s29, 1
          %s325 = scalar_select %p324, %s29, 1
          %p326 = scmp.lt.s32.totalorder %s30, 0
          %s327 = scalar_select %p326, %s30, 0
          %s328 = sadd.s32 %s327, %s325
          %s329 = smul.addr %s328, 8
          %s330 = scalar_lea.vmem %s1, %s329
        $region44: #{tpu_custom_call.1} parent=35 // pred_fallthru
          _
        // Predicated region
        $region45: #{tpu_custom_call.1} parent=35 // pred_check
          %p331 = pneg %p110
        $region46: #{tpu_custom_call.1} parent=35 // pred_check_branch
          %333 = sbr.rel (%p331) target = $region48
        $region47: #{tpu_custom_call.1} parent=35 // pred_region
          %p334 = scmp.lt.s32.totalorder %s29, 1
          %s335 = scalar_select %p334, %s29, 1
          %s336 = smul.addr %s335, 4
          %s337 = scalar_lea.vmem %s2, %s336
        $region48: #{tpu_custom_call.1} parent=35 // pred_fallthru
          _
      $region36: #{tpu_custom_call.1} parent=5 // pred_fallthru
        _
      %p338 = scmp.le.s32.totalorder 1, %s22
      %p339 = scmp.lt.s32.totalorder %s22, 3
      %p340 = pnand %p338, %p339
      %p341 = pneg %p340
      // Predicated region
      $region49: #{tpu_custom_call.1} parent=5 // pred_check
        _
      $region50: #{tpu_custom_call.1} parent=5 // pred_check_branch
        %343 = sbr.rel (%p340) target = $region52
      $region51: #{tpu_custom_call.1} parent=5 // pred_region
        %s344 = ssub.s32 %s22, 1
        %p345 = scmp.lt.s32.totalorder %s31, 1
        %s346 = scalar_select %p345, %s31, 1
        %p347 = scmp.lt.s32.totalorder %s32, 0
        %s348 = scalar_select %p347, %s32, 0
        %s349 = sadd.s32 %s348, %s346
        %s350 = smul.addr %s349, 4
        %s351 = scalar_lea.vmem %s0, %s350
        %p352 = pneg %p62
        %p353 = pneg %p59
        %p354 = scmp.lt.s32.totalorder %s31, 1
        %s355 = scalar_select %p354, %s31, 1
        %p356 = scmp.lt.s32.totalorder %s32, 0
        %s357 = scalar_select %p356, %s32, 0
        %s358 = sadd.s32 %s357, %s355
        %s359 = smul.addr %s358, 8
        %s360 = scalar_lea.vmem %s1, %s359
        %p361 = pneg %p90
        %p362 = pneg %p87
        %p363 = scmp.lt.s32.totalorder %s31, 1
        %s364 = scalar_select %p363, %s31, 1
        %s365 = smul.addr %s364, 4
        %s366 = scalar_lea.vmem %s2, %s365
        %p367 = pneg %p116
        %p368 = pneg %p113
        %p369 = pneg %p137
        %p370 = pneg %p134
        %p371 = pneg %p158
        %p372 = pneg %p155
        %p373 = pneg %p179
        %p374 = pneg %p176
        %p375 = pneg %p200
        %p376 = pneg %p197
        %p377 = pneg %p221
        %p378 = pneg %p218
        %p379 = pneg %p249
        %p380 = pneg %p246
        %s381 = sand.u32 %s236, 1
        %s382 = scalar_lea.sflag [#allocation3], %s381
        %s383 = sand.u32 %s236, 1
        %s384 = smul.addr %s383, 4
        %s385 = scalar_lea.vmem [#allocation2], %s384
        %p386 = pneg %p277
        %p387 = pneg %p274
        %s388 = sand.u32 %s264, 1
        %s389 = scalar_lea.sflag [#allocation5], %s388
        %s390 = sand.u32 %s264, 1
        %s391 = smul.addr %s390, 4
        %s392 = scalar_lea.vmem [#allocation4], %s391
        %p393 = scmp.lt.s32.totalorder %s31, 1
        %s394 = scalar_select %p393, %s31, 1
        %p395 = scmp.lt.s32.totalorder %s32, 0
        %s396 = scalar_select %p395, %s32, 0
        %s397 = sadd.s32 %s396, %s394
        %s398 = smul.addr %s397, 4
        %s399 = scalar_lea.vmem %s0, %s398
        %p400 = scmp.lt.s32.totalorder %s31, 1
        %s401 = scalar_select %p400, %s31, 1
        %p402 = scmp.lt.s32.totalorder %s32, 0
        %s403 = scalar_select %p402, %s32, 0
        %s404 = sadd.s32 %s403, %s401
        %s405 = smul.addr %s404, 8
        %s406 = scalar_lea.vmem %s1, %s405
        %p407 = scmp.lt.s32.totalorder %s31, 1
        %s408 = scalar_select %p407, %s31, 1
        %s409 = smul.addr %s408, 4
        %s410 = scalar_lea.vmem %s2, %s409
        %v411 = vld [vmem:[%s399] sm:$0xf]
        %v412 = vld [vmem:[%s410] sm:$0xf]
        %v413 = vlaneseq
        %v414 = vand.u32 %v413, 127
        %s415 = smul.u32 %s32, 16
        %v416 = vstv %s415
        %v417 = vadd.s32 %v414, %v416
        %vm418 = vcmp.ge.s32.totalorder %v417, 2
        %vm419 = vcmp.lt.s32.totalorder %v417, 18
        %vm420 = vmand %vm418, %vm419
        %422 = vset.pattern.permute.xlu0 0
        %423 = vperm.xlu0 %422, %v412
        %v424 = vpop.permute.xlu0 %423
        %v426 = vadd.f32 %v411, %v424
        %v427 = vsel %vm420, 1, 0
        %vm428 = vcmp.eq.s32.totalorder %v427, 1
        %v429 = vsel %vm428, %v426, 0.0
        %v430 = vld [vmem:[%s3] sm:$0xff]
        %s431 = scalar_lea.vmem %s3, 8
        %v432 = vld [vmem:[%s431] sm:$0xff]
        %434 = vrot.lane.b32.xlu0 %v429, 126
        %v435 = vpop.permute.xlu0 %434
        %vm436 = vcmask 31744
        %v438 = vsel %vm436, %v432, 0
        %vm440 = vcmask 1043456
        %v441 = vsel %vm440, %v435, 0
        %443 = vmatprep.subr.mxu0 0.0
        %444 = vmatpush1.msra.mxu0 %v441
        %445 = vmatprep.subr.mxu0 0.0
        %446 = vmatpush1.msra.mxu0 0.0
        %447 = vmatprep.subr.mxu0 0.0
        %448 = vmatpush1.msra.mxu0 0.0
        %449 = vmatprep.subr.mxu0 0.0
        %450 = vmatpush1.msra.mxu0 0.0
        %451 = vmatprep.subr.mxu0 0.0
        %452 = vmatpush1.msra.mxu0 0.0
        %453 = vmatprep.subr.mxu0 0.0
        %454 = vmatpush1.msra.mxu0 0.0
        %455 = vmatprep.subr.mxu0 0.0
        %456 = vmatpush1.msra.mxu0 0.0
        %457 = vmatprep.subr.mxu0 0.0
        %458 = vmatpush1.msra.mxu0 0.0
        %459 = vmatprep.subr.mxu0 0.0
        %460 = vmatpush1.msra.mxu0 0.0
        %461 = vmatprep.subr.mxu0 0.0
        %462 = vmatpush1.msra.mxu0 0.0
        %463 = vmatprep.subr.mxu0 0.0
        %464 = vmatpush1.msra.mxu0 0.0
        %465 = vmatprep.subr.mxu0 0.0
        %466 = vmatpush1.msra.mxu0 0.0
        %467 = vmatprep.subr.mxu0 0.0
        %468 = vmatpush1.msra.mxu0 0.0
        %469 = vmatprep.subr.mxu0 0.0
        %470 = vmatpush1.msra.mxu0 0.0
        %471 = vmatprep.subr.mxu0 0.0
        %472 = vmatpush1.msra.mxu0 0.0
        %473 = vmatprep.subr.mxu0 0.0
        %474 = vmatpush1.msra.mxu0 0.0
        %475 = vmatprep.subr.mxu0 0.0
        %476 = vmatpush1.msra.mxu0 0.0
        %477 = vmatprep.subr.mxu0 0.0
        %478 = vmatpush1.msra.mxu0 0.0
        %479 = vmatprep.subr.mxu0 0.0
        %480 = vmatpush1.msra.mxu0 0.0
        %481 = vmatprep.subr.mxu0 0.0
        %482 = vmatpush1.msra.mxu0 0.0
        %483 = vmatprep.subr.mxu0 0.0
        %484 = vmatpush1.msra.mxu0 0.0
        %485 = vmatprep.subr.mxu0 0.0
        %486 = vmatpush1.msra.mxu0 0.0
        %487 = vmatprep.subr.mxu0 0.0
        %488 = vmatpush1.msra.mxu0 0.0
        %489 = vmatprep.subr.mxu0 0.0
        %490 = vmatpush1.msra.mxu0 0.0
        %491 = vmatprep.subr.mxu0 0.0
        %492 = vmatpush1.msra.mxu0 0.0
        %493 = vmatprep.subr.mxu0 0.0
        %494 = vmatpush1.msra.mxu0 0.0
        %495 = vmatprep.subr.mxu0 0.0
        %496 = vmatpush1.msra.mxu0 0.0
        %497 = vmatprep.subr.mxu0 0.0
        %498 = vmatpush1.msra.mxu0 0.0
        %499 = vmatprep.subr.mxu0 0.0
        %500 = vmatpush1.msra.mxu0 0.0
        %501 = vmatprep.subr.mxu0 0.0
        %502 = vmatpush1.msra.mxu0 0.0
        %503 = vmatprep.subr.mxu0 0.0
        %504 = vmatpush1.msra.mxu0 0.0
        %505 = vmatprep.subr.mxu0 0.0
        %506 = vmatpush1.msra.mxu0 0.0
        %507 = vmatprep.mubr.f32.mxu0 0.0
        %508 = vmatmul.mubr.f32.gmra.mrb[0].mxu0 %v438
        %v509 = vpop.f32.mrb[0].mxu0
        %v510 = vadd.f32 0.0, %v509
        %v511 = vpop.f32.mrb[0].mxu0
        %512 = vdwg.mxu0
        %v514 = vsel %vm436, %v430, 0
        %v516 = vsel %vm440, %v429, 0
        %518 = vmatprep.subr.mxu0 0.0
        %519 = vmatpush1.msra.mxu0 %v516
        %520 = vmatprep.subr.mxu0 0.0
        %521 = vmatpush1.msra.mxu0 0.0
        %522 = vmatprep.subr.mxu0 0.0
        %523 = vmatpush1.msra.mxu0 0.0
        %524 = vmatprep.subr.mxu0 0.0
        %525 = vmatpush1.msra.mxu0 0.0
        %526 = vmatprep.subr.mxu0 0.0
        %527 = vmatpush1.msra.mxu0 0.0
        %528 = vmatprep.subr.mxu0 0.0
        %529 = vmatpush1.msra.mxu0 0.0
        %530 = vmatprep.subr.mxu0 0.0
        %531 = vmatpush1.msra.mxu0 0.0
        %532 = vmatprep.subr.mxu0 0.0
        %533 = vmatpush1.msra.mxu0 0.0
        %534 = vmatprep.subr.mxu0 0.0
        %535 = vmatpush1.msra.mxu0 0.0
        %536 = vmatprep.subr.mxu0 0.0
        %537 = vmatpush1.msra.mxu0 0.0
        %538 = vmatprep.subr.mxu0 0.0
        %539 = vmatpush1.msra.mxu0 0.0
        %540 = vmatprep.subr.mxu0 0.0
        %541 = vmatpush1.msra.mxu0 0.0
        %542 = vmatprep.subr.mxu0 0.0
        %543 = vmatpush1.msra.mxu0 0.0
        %544 = vmatprep.subr.mxu0 0.0
        %545 = vmatpush1.msra.mxu0 0.0
        %546 = vmatprep.subr.mxu0 0.0
        %547 = vmatpush1.msra.mxu0 0.0
        %548 = vmatprep.subr.mxu0 0.0
        %549 = vmatpush1.msra.mxu0 0.0
        %550 = vmatprep.subr.mxu0 0.0
        %551 = vmatpush1.msra.mxu0 0.0
        %552 = vmatprep.subr.mxu0 0.0
        %553 = vmatpush1.msra.mxu0 0.0
        %554 = vmatprep.subr.mxu0 0.0
        %555 = vmatpush1.msra.mxu0 0.0
        %556 = vmatprep.subr.mxu0 0.0
        %557 = vmatpush1.msra.mxu0 0.0
        %558 = vmatprep.subr.mxu0 0.0
        %559 = vmatpush1.msra.mxu0 0.0
        %560 = vmatprep.subr.mxu0 0.0
        %561 = vmatpush1.msra.mxu0 0.0
        %562 = vmatprep.subr.mxu0 0.0
        %563 = vmatpush1.msra.mxu0 0.0
        %564 = vmatprep.subr.mxu0 0.0
        %565 = vmatpush1.msra.mxu0 0.0
        %566 = vmatprep.subr.mxu0 0.0
        %567 = vmatpush1.msra.mxu0 0.0
        %568 = vmatprep.subr.mxu0 0.0
        %569 = vmatpush1.msra.mxu0 0.0
        %570 = vmatprep.subr.mxu0 0.0
        %571 = vmatpush1.msra.mxu0 0.0
        %572 = vmatprep.subr.mxu0 0.0
        %573 = vmatpush1.msra.mxu0 0.0
        %574 = vmatprep.subr.mxu0 0.0
        %575 = vmatpush1.msra.mxu0 0.0
        %576 = vmatprep.subr.mxu0 0.0
        %577 = vmatpush1.msra.mxu0 0.0
        %578 = vmatprep.subr.mxu0 0.0
        %579 = vmatpush1.msra.mxu0 0.0
        %580 = vmatprep.subr.mxu0 0.0
        %581 = vmatpush1.msra.mxu0 0.0
        %582 = vmatprep.mubr.f32.mxu0 0.0
        %583 = vmatmul.mubr.f32.gmra.mrb[0].mxu0 %v514
        %v584 = vpop.f32.mrb[0].mxu0
        %v585 = vadd.f32 %v510, %v584
        %v586 = vpop.f32.mrb[0].mxu0
        %587 = vdwg.mxu0
        %s588 = scalar_lea.vmem %s3, 16
        %v589 = vld [vmem:[%s588] sm:$0xff]
        %590 = vrot.lane.b32.xlu0 %v429, 124
        %v591 = vpop.permute.xlu0 %590
        %v593 = vsel %vm436, %v589, 0
        %v595 = vsel %vm440, %v591, 0
        %597 = vmatprep.subr.mxu0 0.0
        %598 = vmatpush1.msra.mxu0 %v595
        %599 = vmatprep.subr.mxu0 0.0
        %600 = vmatpush1.msra.mxu0 0.0
        %601 = vmatprep.subr.mxu0 0.0
        %602 = vmatpush1.msra.mxu0 0.0
        %603 = vmatprep.subr.mxu0 0.0
        %604 = vmatpush1.msra.mxu0 0.0
        %605 = vmatprep.subr.mxu0 0.0
        %606 = vmatpush1.msra.mxu0 0.0
        %607 = vmatprep.subr.mxu0 0.0
        %608 = vmatpush1.msra.mxu0 0.0
        %609 = vmatprep.subr.mxu0 0.0
        %610 = vmatpush1.msra.mxu0 0.0
        %611 = vmatprep.subr.mxu0 0.0
        %612 = vmatpush1.msra.mxu0 0.0
        %613 = vmatprep.subr.mxu0 0.0
        %614 = vmatpush1.msra.mxu0 0.0
        %615 = vmatprep.subr.mxu0 0.0
        %616 = vmatpush1.msra.mxu0 0.0
        %617 = vmatprep.subr.mxu0 0.0
        %618 = vmatpush1.msra.mxu0 0.0
        %619 = vmatprep.subr.mxu0 0.0
        %620 = vmatpush1.msra.mxu0 0.0
        %621 = vmatprep.subr.mxu0 0.0
        %622 = vmatpush1.msra.mxu0 0.0
        %623 = vmatprep.subr.mxu0 0.0
        %624 = vmatpush1.msra.mxu0 0.0
        %625 = vmatprep.subr.mxu0 0.0
        %626 = vmatpush1.msra.mxu0 0.0
        %627 = vmatprep.subr.mxu0 0.0
        %628 = vmatpush1.msra.mxu0 0.0
        %629 = vmatprep.subr.mxu0 0.0
        %630 = vmatpush1.msra.mxu0 0.0
        %631 = vmatprep.subr.mxu0 0.0
        %632 = vmatpush1.msra.mxu0 0.0
        %633 = vmatprep.subr.mxu0 0.0
        %634 = vmatpush1.msra.mxu0 0.0
        %635 = vmatprep.subr.mxu0 0.0
        %636 = vmatpush1.msra.mxu0 0.0
        %637 = vmatprep.subr.mxu0 0.0
        %638 = vmatpush1.msra.mxu0 0.0
        %639 = vmatprep.subr.mxu0 0.0
        %640 = vmatpush1.msra.mxu0 0.0
        %641 = vmatprep.subr.mxu0 0.0
        %642 = vmatpush1.msra.mxu0 0.0
        %643 = vmatprep.subr.mxu0 0.0
        %644 = vmatpush1.msra.mxu0 0.0
        %645 = vmatprep.subr.mxu0 0.0
        %646 = vmatpush1.msra.mxu0 0.0
        %647 = vmatprep.subr.mxu0 0.0
        %648 = vmatpush1.msra.mxu0 0.0
        %649 = vmatprep.subr.mxu0 0.0
        %650 = vmatpush1.msra.mxu0 0.0
        %651 = vmatprep.subr.mxu0 0.0
        %652 = vmatpush1.msra.mxu0 0.0
        %653 = vmatprep.subr.mxu0 0.0
        %654 = vmatpush1.msra.mxu0 0.0
        %655 = vmatprep.subr.mxu0 0.0
        %656 = vmatpush1.msra.mxu0 0.0
        %657 = vmatprep.subr.mxu0 0.0
        %658 = vmatpush1.msra.mxu0 0.0
        %659 = vmatprep.subr.mxu0 0.0
        %660 = vmatpush1.msra.mxu0 0.0
        %661 = vmatprep.mubr.f32.mxu0 0.0
        %662 = vmatmul.mubr.f32.gmra.mrb[0].mxu0 %v593
        %v663 = vpop.f32.mrb[0].mxu0
        %v664 = vadd.f32 0.0, %v663
        %v665 = vpop.f32.mrb[0].mxu0
        %666 = vdwg.mxu0
        %v667 = vadd.f32 %v585, %v664
        %v668 = vld [vmem:[%s4] sm:$0xff]
        %v669 = vld [vmem:[%s406] sm:$0xff]
        %vm670 = vcmask 64512
        %v672 = vsel %vm670, %v668, 0
        %674 = vmatprep.subr.mxu0 0.0
        %675 = vmatpush1.msra.mxu0 %v669
        %676 = vmatprep.subr.mxu0 0.0
        %677 = vmatpush1.msra.mxu0 0.0
        %678 = vmatprep.subr.mxu0 0.0
        %679 = vmatpush1.msra.mxu0 0.0
        %680 = vmatprep.subr.mxu0 0.0
        %681 = vmatpush1.msra.mxu0 0.0
        %682 = vmatprep.subr.mxu0 0.0
        %683 = vmatpush1.msra.mxu0 0.0
        %684 = vmatprep.subr.mxu0 0.0
        %685 = vmatpush1.msra.mxu0 0.0
        %686 = vmatprep.subr.mxu0 0.0
        %687 = vmatpush1.msra.mxu0 0.0
        %688 = vmatprep.subr.mxu0 0.0
        %689 = vmatpush1.msra.mxu0 0.0
        %690 = vmatprep.subr.mxu0 0.0
        %691 = vmatpush1.msra.mxu0 0.0
        %692 = vmatprep.subr.mxu0 0.0
        %693 = vmatpush1.msra.mxu0 0.0
        %694 = vmatprep.subr.mxu0 0.0
        %695 = vmatpush1.msra.mxu0 0.0
        %696 = vmatprep.subr.mxu0 0.0
        %697 = vmatpush1.msra.mxu0 0.0
        %698 = vmatprep.subr.mxu0 0.0
        %699 = vmatpush1.msra.mxu0 0.0
        %700 = vmatprep.subr.mxu0 0.0
        %701 = vmatpush1.msra.mxu0 0.0
        %702 = vmatprep.subr.mxu0 0.0
        %703 = vmatpush1.msra.mxu0 0.0
        %704 = vmatprep.subr.mxu0 0.0
        %705 = vmatpush1.msra.mxu0 0.0
        %706 = vmatprep.subr.mxu0 0.0
        %707 = vmatpush1.msra.mxu0 0.0
        %708 = vmatprep.subr.mxu0 0.0
        %709 = vmatpush1.msra.mxu0 0.0
        %710 = vmatprep.subr.mxu0 0.0
        %711 = vmatpush1.msra.mxu0 0.0
        %712 = vmatprep.subr.mxu0 0.0
        %713 = vmatpush1.msra.mxu0 0.0
        %714 = vmatprep.subr.mxu0 0.0
        %715 = vmatpush1.msra.mxu0 0.0
        %716 = vmatprep.subr.mxu0 0.0
        %717 = vmatpush1.msra.mxu0 0.0
        %718 = vmatprep.subr.mxu0 0.0
        %719 = vmatpush1.msra.mxu0 0.0
        %720 = vmatprep.subr.mxu0 0.0
        %721 = vmatpush1.msra.mxu0 0.0
        %722 = vmatprep.subr.mxu0 0.0
        %723 = vmatpush1.msra.mxu0 0.0
        %724 = vmatprep.subr.mxu0 0.0
        %725 = vmatpush1.msra.mxu0 0.0
        %726 = vmatprep.subr.mxu0 0.0
        %727 = vmatpush1.msra.mxu0 0.0
        %728 = vmatprep.subr.mxu0 0.0
        %729 = vmatpush1.msra.mxu0 0.0
        %730 = vmatprep.subr.mxu0 0.0
        %731 = vmatpush1.msra.mxu0 0.0
        %732 = vmatprep.subr.mxu0 0.0
        %733 = vmatpush1.msra.mxu0 0.0
        %734 = vmatprep.subr.mxu0 0.0
        %735 = vmatpush1.msra.mxu0 0.0
        %736 = vmatprep.subr.mxu0 0.0
        %737 = vmatpush1.msra.mxu0 0.0
        %738 = vmatprep.mubr.f32.mxu0 0.0
        %739 = vmatmul.mubr.f32.gmra.mrb[0].mxu0 %v672
        %v740 = vpop.f32.mrb[0].mxu0
        %v741 = vadd.f32 0.0, %v740
        %v742 = vpop.f32.mrb[0].mxu0
        %743 = vdwg.mxu0
        %v744 = vadd.f32 %v667, %v741
        %v745 = vld [vmem:[%s5] sm:$0xff]
        %747 = vset.pattern.permute.xlu0 0
        %748 = vperm.xlu0 %747, %v745
        %v749 = vpop.permute.xlu0 %748
        %v751 = vadd.f32 %v744, %v749
        %v752 = vxor.u32 %v751, 2147483648
        %v753 = vmul.f32 %v752, 1.442695
        %v754 = vpow.pop %v753
        %v755 = vadd.f32 %v754, 1.0
        %v756 = vrcp.pop %v755
        %v757 = vmul.f32 1.0, %v756
        %v758 = vtanh.pop %v751
        %v760 = vrot.slane %v758, 4
        %v762 = vmul.f32 %v757, %v760
        %v763 = vld [vmem:[%s6] sm:$0xff]
        %v764 = vld [vmem:[%s7] sm:$0xff]
        %766 = vset.pattern.permute.xlu0 0
        %767 = vperm.xlu0 %766, %v764
        %v768 = vpop.permute.xlu0 %767
        %v771 = vsel %vm436, %v763, 0
        %v774 = vsel %vm440, %v762, 0
        %776 = vmatprep.subr.mxu0 0.0
        %777 = vmatpush1.msra.mxu0 %v774
        %778 = vmatprep.subr.mxu0 0.0
        %779 = vmatpush1.msra.mxu0 0.0
        %780 = vmatprep.subr.mxu0 0.0
        %781 = vmatpush1.msra.mxu0 0.0
        %782 = vmatprep.subr.mxu0 0.0
        %783 = vmatpush1.msra.mxu0 0.0
        %784 = vmatprep.subr.mxu0 0.0
        %785 = vmatpush1.msra.mxu0 0.0
        %786 = vmatprep.subr.mxu0 0.0
        %787 = vmatpush1.msra.mxu0 0.0
        %788 = vmatprep.subr.mxu0 0.0
        %789 = vmatpush1.msra.mxu0 0.0
        %790 = vmatprep.subr.mxu0 0.0
        %791 = vmatpush1.msra.mxu0 0.0
        %792 = vmatprep.subr.mxu0 0.0
        %793 = vmatpush1.msra.mxu0 0.0
        %794 = vmatprep.subr.mxu0 0.0
        %795 = vmatpush1.msra.mxu0 0.0
        %796 = vmatprep.subr.mxu0 0.0
        %797 = vmatpush1.msra.mxu0 0.0
        %798 = vmatprep.subr.mxu0 0.0
        %799 = vmatpush1.msra.mxu0 0.0
        %800 = vmatprep.subr.mxu0 0.0
        %801 = vmatpush1.msra.mxu0 0.0
        %802 = vmatprep.subr.mxu0 0.0
        %803 = vmatpush1.msra.mxu0 0.0
        %804 = vmatprep.subr.mxu0 0.0
        %805 = vmatpush1.msra.mxu0 0.0
        %806 = vmatprep.subr.mxu0 0.0
        %807 = vmatpush1.msra.mxu0 0.0
        %808 = vmatprep.subr.mxu0 0.0
        %809 = vmatpush1.msra.mxu0 0.0
        %810 = vmatprep.subr.mxu0 0.0
        %811 = vmatpush1.msra.mxu0 0.0
        %812 = vmatprep.subr.mxu0 0.0
        %813 = vmatpush1.msra.mxu0 0.0
        %814 = vmatprep.subr.mxu0 0.0
        %815 = vmatpush1.msra.mxu0 0.0
        %816 = vmatprep.subr.mxu0 0.0
        %817 = vmatpush1.msra.mxu0 0.0
        %818 = vmatprep.subr.mxu0 0.0
        %819 = vmatpush1.msra.mxu0 0.0
        %820 = vmatprep.subr.mxu0 0.0
        %821 = vmatpush1.msra.mxu0 0.0
        %822 = vmatprep.subr.mxu0 0.0
        %823 = vmatpush1.msra.mxu0 0.0
        %824 = vmatprep.subr.mxu0 0.0
        %825 = vmatpush1.msra.mxu0 0.0
        %826 = vmatprep.subr.mxu0 0.0
        %827 = vmatpush1.msra.mxu0 0.0
        %828 = vmatprep.subr.mxu0 0.0
        %829 = vmatpush1.msra.mxu0 0.0
        %830 = vmatprep.subr.mxu0 0.0
        %831 = vmatpush1.msra.mxu0 0.0
        %832 = vmatprep.subr.mxu0 0.0
        %833 = vmatpush1.msra.mxu0 0.0
        %834 = vmatprep.subr.mxu0 0.0
        %835 = vmatpush1.msra.mxu0 0.0
        %836 = vmatprep.subr.mxu0 0.0
        %837 = vmatpush1.msra.mxu0 0.0
        %838 = vmatprep.subr.mxu0 0.0
        %839 = vmatpush1.msra.mxu0 0.0
        %840 = vmatprep.mubr.f32.mxu0 0.0
        %841 = vmatmul.mubr.f32.gmra.mrb[0].mxu0 %v771
        %v842 = vpop.f32.mrb[0].mxu0
        %v843 = vadd.f32 %v768, %v842
        %v844 = vpop.f32.mrb[0].mxu0
        %845 = vdwg.mxu0
        %847 = vrot.lane.b32.xlu0 %v843, 2
        %v848 = vpop.permute.xlu0 %847
        %v850 = vadd.f32 %v411, %v848
        %v851 = vmul.f32 %v850, 0.70710677
        %853 = vrot.lane.b32.xlu0 %v851, 126
        %v854 = vpop.permute.xlu0 %853
        %vm856 = vcmask 125952
        %857 = vst.msk [vmem:[%s385] sm:$0xf] %vm856, %v854
        %vm858 = vcmask 130052
        %859 = vst.msk [vmem:[%s392 - $0x4] sm:$0xf0] %vm858, %v843
        %s860 = sand.u32 %s236, 1
        %s861 = scalar_lea.sflag [#allocation3], %s860
        %s862 = sand.u32 %s236, 1
        %s863 = smul.addr %s862, 4
        %s864 = scalar_lea.vmem [#allocation2], %s863
        %s865 = sand.u32 %s264, 1
        %s866 = scalar_lea.sflag [#allocation5], %s865
        %s867 = sand.u32 %s264, 1
        %s868 = smul.addr %s867, 4
        %s869 = scalar_lea.vmem [#allocation4], %s868
        // Predicated region
        $region53: #{tpu_custom_call.1} parent=51 // pred_check
          %p870 = pneg %p246
        $region54: #{tpu_custom_call.1} parent=51 // pred_check_branch
          %872 = sbr.rel (%p870) target = $region56
        $region55: #{tpu_custom_call.1} parent=51 // pred_region
          %s874 = ssub.s32 64, 64
          %875 = vsyncadd %s861, %s874
          %s876 = sadd.s32 %s32, %s31
          %s877 = smul.addr %s876, 64
          %s878 = scalar_lea.hbm %s8, %s877
          %s880 = sshll.u32 %s864, 4
          %s881 = int_to_ptr.vmem [resolvable:$true] %s880
          %883 = dma.vmem_to_hbm [thread:$0]  %s881, 64, %s878, %s861
        $region56: #{tpu_custom_call.1} parent=51 // pred_fallthru
          _
        // Predicated region
        $region57: #{tpu_custom_call.1} parent=51 // pred_check
          %p884 = pneg %p274
        $region58: #{tpu_custom_call.1} parent=51 // pred_check_branch
          %886 = sbr.rel (%p884) target = $region60
        $region59: #{tpu_custom_call.1} parent=51 // pred_region
          %s888 = ssub.s32 64, 64
          %889 = vsyncadd %s866, %s888
          %s890 = sadd.s32 %s32, %s31
          %s891 = smul.addr %s890, 64
          %s892 = scalar_lea.hbm %s9, %s891
          %s894 = sshll.u32 %s869, 4
          %s895 = int_to_ptr.vmem [resolvable:$true] %s894
          %897 = dma.vmem_to_hbm [thread:$0]  %s895, 64, %s892, %s866
        $region60: #{tpu_custom_call.1} parent=51 // pred_fallthru
          _
      $region52: #{tpu_custom_call.1} parent=5 // pred_fallthru
        _
      %p898 = scmp.le.s32.totalorder 2, %s22
      // Predicated region
      $region61: #{tpu_custom_call.1} parent=5 // pred_check
        %p899 = pneg %p898
      $region62: #{tpu_custom_call.1} parent=5 // pred_check_branch
        %901 = sbr.rel (%p899) target = $region64
      $region63: #{tpu_custom_call.1} parent=5 // pred_region
        %s902 = ssub.s32 %s22, 2
        // Predicated region
        $region65: #{tpu_custom_call.1} parent=63 // pred_check
          %p903 = pneg %p252
        $region66: #{tpu_custom_call.1} parent=63 // pred_check_branch
          %905 = sbr.rel (%p903) target = $region68
        $region67: #{tpu_custom_call.1} parent=63 // pred_region
          %s906 = sand.u32 %s237, 1
          %s907 = scalar_lea.sflag [#allocation3], %s906
          %s908 = sand.u32 %s237, 1
          %s909 = smul.addr %s908, 4
          %s910 = scalar_lea.vmem [#allocation2], %s909
          %911 = dma.done %s907, 64
        $region68: #{tpu_custom_call.1} parent=63 // pred_fallthru
          _
        // Predicated region
        $region69: #{tpu_custom_call.1} parent=63 // pred_check
          %p912 = pneg %p280
        $region70: #{tpu_custom_call.1} parent=63 // pred_check_branch
          %914 = sbr.rel (%p912) target = $region72
        $region71: #{tpu_custom_call.1} parent=63 // pred_region
          %s915 = sand.u32 %s265, 1
          %s916 = scalar_lea.sflag [#allocation5], %s915
          %s917 = sand.u32 %s265, 1
          %s918 = smul.addr %s917, 4
          %s919 = scalar_lea.vmem [#allocation4], %s918
          %920 = dma.done %s916, 64
        $region72: #{tpu_custom_call.1} parent=63 // pred_fallthru
          _
      $region64: #{tpu_custom_call.1} parent=5 // pred_fallthru
        _
    $region6: #{tpu_custom_call.1} parent=1 // loop_footer
      %s26 = sadd.s32 1, %s22
    $region7: #{tpu_custom_call.1} parent=1 // loop_footer_branch
      %21 = sbr.rel target = $region3
    $region8: #{tpu_custom_call.1} parent=1 // loop_exit
      _
    %921 = vsyncpa [#allocation3], 1
    %s922 = scalar_lea.sflag [#allocation3], 1
    %923 = vsyncpa %s922, 1
    %924 = vsyncpa [#allocation5], 1
    %s925 = scalar_lea.sflag [#allocation5], 1
    %926 = vsyncpa %s925, 1

</llo_original>
